<compile_context>
chip_gen: v7x
topology: tpu7x:2x2x1
jax: 0.10.0
libtpu: 0.0.40
codegen_flags: <defaults>
</compile_context>

<pallas_src>
import jax
import jax.numpy as jnp
from jax import lax
from jax.experimental import pallas as pl
from jax.experimental.pallas import tpu as pltpu

# ----- problem sizes (small, consistent with the module's forward) -----
N_CLASS = 16     # vocab size == output classes (as in the PyTorch script)
EMB_SIZE = 16
N_HIDDEN = 32
BATCH = 2
SEQ_LEN = 8

# ----- padded (vreg-aligned) kernel sizes -----
HID_PAD = 128    # hidden padded to one full lane width -> gate slices are lane-aligned
CLS_PAD = 128    # classes padded to full lane width     -> lane-dense output store
BATCH_PAD = 8    # batch padded to full sublane height   -> sublane-full output store


def lstm_kernel(xproj_ref, whh_ref, wout_ref, bout_ref, out_ref):
    """Unrolled LSTM recurrence + last-step linear head; everything resident in VMEM."""
    S, Bp, _ = xproj_ref.shape
    Hp = whh_ref.shape[0]

    h = jnp.zeros((Bp, Hp), jnp.float32)
    c = jnp.zeros((Bp, Hp), jnp.float32)

    # Fully unrolled recurrence (S = 8): straight-line code, no per-step pipeline overhead.
    for t in range(S):
        # Pre-activation (x@W_ih^T + b_ih + b_hh) is precomputed per token in the wrapper;
        # only the recurrent h @ W_hh^T matmul remains on the serial dependency chain.
        gates = xproj_ref[t] + jnp.dot(
            h.astype(jnp.bfloat16), whh_ref[...],
            preferred_element_type=jnp.float32)                  # (Bp, 4*Hp) f32

        # Lane-aligned 128-wide gate slices; torch gate order [i, f, g, o].
        i_g = jax.nn.sigmoid(gates[:, 0 * Hp:1 * Hp])
        f_g = jax.nn.sigmoid(gates[:, 1 * Hp:2 * Hp])
        g_g = jnp.tanh(gates[:, 2 * Hp:3 * Hp])
        o_g = jax.nn.sigmoid(gates[:, 3 * Hp:4 * Hp])

        c = f_g * c + i_g * g_g
        h = o_g * jnp.tanh(c)

    # Last-step linear head; single lane-dense (Bp, Cp) store.
    out_ref[...] = (jnp.dot(h.astype(jnp.bfloat16), wout_ref[...],
                            preferred_element_type=jnp.float32)
                    + bout_ref[...])


@jax.jit
def text_lstm_forward(X, emb_table, w_ih, w_hh, b_ih, b_hh, w_out, b_out):
    """X: (batch, seq) int32 token ids. Returns (batch, n_class) float32 logits."""
    B, S = X.shape
    V, E = emb_table.shape
    H = w_hh.shape[1]
    C = w_out.shape[0]
    Hp, Cp, Bp = HID_PAD, CLS_PAD, BATCH_PAD

    # --- token-only work, precomputed off the recurrent critical path -------------------
    # proj_table[v] = emb[v] @ W_ih^T + b_ih + b_hh, padded per-gate H -> Hp (zeros in the
    # padded hidden columns keep padded hidden units exactly 0 through the recurrence).
    proj = jnp.dot(emb_table, w_ih.T) + (b_ih + b_hh)            # (V, 4*H) f32
    proj_table = jnp.pad(proj.reshape(V, 4, H),
                         ((0, 0), (0, 0), (0, Hp - H))).reshape(V, 4 * Hp)
    x_proj = jnp.transpose(proj_table[X], (1, 0, 2))             # (S, B, 4*Hp) time-major
    x_proj = jnp.pad(x_proj, ((0, 0), (0, Bp - B), (0, 0)))      # (S, Bp, 4*Hp)

    # --- recurrent / head weights: zero-padded and cast to bf16 (MXU-only operands) -----
    whh_t = jnp.pad(w_hh.T.reshape(H, 4, H),
                    ((0, Hp - H), (0, 0), (0, Hp - H))
                    ).reshape(Hp, 4 * Hp).astype(jnp.bfloat16)   # (Hp, 4*Hp)
    wout_t = jnp.pad(w_out.T, ((0, Hp - H), (0, Cp - C))
                     ).astype(jnp.bfloat16)                      # (Hp, Cp)
    bout = jnp.pad(b_out, (0, Cp - C)).reshape(1, Cp)            # (1, Cp) f32

    out_padded = pl.pallas_call(
        lstm_kernel,
        out_shape=jax.ShapeDtypeStruct((Bp, Cp), jnp.float32),
        grid=(1,),                       # single invocation; recurrence unrolled in-kernel
        in_specs=[
            pl.BlockSpec((S, Bp, 4 * Hp), lambda i: (0, 0, 0)),  # precomputed pre-activations
            pl.BlockSpec((Hp, 4 * Hp), lambda i: (0, 0)),        # W_hh^T (bf16)
            pl.BlockSpec((Hp, Cp), lambda i: (0, 0)),            # W_out^T (bf16)
            pl.BlockSpec((1, Cp), lambda i: (0, 0)),             # b_out
        ],
        out_specs=pl.BlockSpec((Bp, Cp), lambda i: (0, 0)),
        compiler_params=pltpu.CompilerParams(
            dimension_semantics=("arbitrary",)),
        # TODO(synk): if batch grows beyond toy size, add a leading "parallel" batch-tile
        # grid axis so both v7x TensorCores are used.
    )(x_proj, whh_t, wout_t, bout)

    return out_padded[:B, :C]


def reference_forward(X, emb_table, w_ih, w_hh, b_ih, b_hh, w_out, b_out):
    """Pure-JAX reference matching torch semantics (gate order i,f,g,o), high precision."""
    B, S = X.shape
    H = w_hh.shape[1]
    hp = lax.Precision.HIGHEST
    x_emb = jnp.transpose(emb_table[X], (1, 0, 2))   # (S, B, E)

    def step(carry, x_t):
        h, c = carry
        gates = (jnp.dot(x_t, w_ih.T, precision=hp) + b_ih
                 + jnp.dot(h, w_hh.T, precision=hp) + b_hh)
        i = jax.nn.sigmoid(gates[:, 0 * H:1 * H])
        f = jax.nn.sigmoid(gates[:, 1 * H:2 * H])
        g = jnp.tanh(gates[:, 2 * H:3 * H])
        o = jax.nn.sigmoid(gates[:, 3 * H:4 * H])
        c = f * c + i * g
        h = o * jnp.tanh(c)
        return (h, c), h

    h0 = jnp.zeros((B, H), jnp.float32)
    c0 = jnp.zeros((B, H), jnp.float32)
    (h_last, _), _ = lax.scan(step, (h0, c0), x_emb)
    return jnp.dot(h_last, w_out.T, precision=hp) + b_out


if __name__ == "__main__":
    key = jax.random.PRNGKey(0)
    ks = jax.random.split(key, 8)

    # Deterministic parameter init (shapes match nn.Embedding / nn.LSTM / nn.Linear).
    emb_table = jax.random.normal(ks[0], (N_CLASS, EMB_SIZE), jnp.float32) * 0.1
    k = 1.0 / jnp.sqrt(jnp.float32(N_HIDDEN))
    w_ih = jax.random.uniform(ks[1], (4 * N_HIDDEN, EMB_SIZE), jnp.float32, -k, k)
    w_hh = jax.random.uniform(ks[2], (4 * N_HIDDEN, N_HIDDEN), jnp.float32, -k, k)
    b_ih = jax.random.uniform(ks[3], (4 * N_HIDDEN,), jnp.float32, -k, k)
    b_hh = jax.random.uniform(ks[4], (4 * N_HIDDEN,), jnp.float32, -k, k)
    w_out = jax.random.uniform(ks[5], (N_CLASS, N_HIDDEN), jnp.float32, -k, k)
    b_out = jnp.ones((N_CLASS,), jnp.float32)   # self.b = nn.Parameter(torch.ones([n_class]))

    # Deterministic token ids.
    X = jax.random.randint(ks[6], (BATCH, SEQ_LEN), 0, N_CLASS, dtype=jnp.int32)

    out = text_lstm_forward(X, emb_table, w_ih, w_hh, b_ih, b_hh, w_out, b_out)
    out = jax.block_until_ready(out)

    ref = reference_forward(X, emb_table, w_ih, w_hh, b_ih, b_hh, w_out, b_out)
    assert out.shape == (BATCH, N_CLASS)
    # Tolerance accounts for bf16 MXU operands (explicit bf16 weights / default precision
    # wrapper matmul) vs. a HIGHEST-precision reference; observed error is a few 1e-3.
    assert jnp.allclose(out, ref, atol=2e-2, rtol=2e-2), "mismatch vs JAX reference"

    print("KERNEL_OK")
</pallas_src>

<mosaic_0001>
module attributes {stable_mosaic.version = 11 : i64} {
  func.func @lstm_kernel(%arg0: i32, %arg1: memref<8x8x512xf32, #tpu.memory_space<vmem>>, %arg2: memref<128x512xbf16, #tpu.memory_space<vmem>>, %arg3: memref<128x128xbf16, #tpu.memory_space<vmem>>, %arg4: memref<1x128xf32, #tpu.memory_space<vmem>>, %arg5: memref<8x128xf32, #tpu.memory_space<vmem>>) attributes {dimension_semantics = [#tpu.dimension_semantics<arbitrary>], iteration_bounds = array<i64: 1>, scalar_prefetch = 0 : i64, scratch_operands = 0 : i64, tpu.core_type = #tpu.core_type<tc>, window_params = [{pipeline_mode = #tpu.pipeline_mode<synchronous>, transform_indices = @transform_0, window_bounds = array<i64: 8, 8, 512>}, {pipeline_mode = #tpu.pipeline_mode<synchronous>, transform_indices = @transform_1, window_bounds = array<i64: 128, 512>}, {pipeline_mode = #tpu.pipeline_mode<synchronous>, transform_indices = @transform_2, window_bounds = array<i64: 128, 128>}, {pipeline_mode = #tpu.pipeline_mode<synchronous>, transform_indices = @transform_3, window_bounds = array<i64: 1, 128>}, {pipeline_mode = #tpu.pipeline_mode<synchronous>, transform_indices = @transform_4, window_bounds = array<i64: 8, 128>}]} {
    %cst = arith.constant 0.000000e+00 : f32
    %0 = vector.broadcast %cst : f32 to vector<8x128xf32>
    %cst_0 = arith.constant 0.000000e+00 : f32
    %1 = vector.broadcast %cst_0 : f32 to vector<8x128xf32>
    %c0 = arith.constant 0 : index
    %c0_1 = arith.constant 0 : index
    %c0_2 = arith.constant 0 : index
    %2 = vector.load %arg1[%c0, %c0_1, %c0_2] : memref<8x8x512xf32, #tpu.memory_space<vmem>>, vector<1x8x512xf32>
    %3 = vector.shape_cast %2 : vector<1x8x512xf32> to vector<8x512xf32>
    %4 = arith.truncf %0 : vector<8x128xf32> to vector<8x128xbf16>
    %c0_3 = arith.constant 0 : index
    %c0_4 = arith.constant 0 : index
    %5 = vector.load %arg2[%c0_3, %c0_4] : memref<128x512xbf16, #tpu.memory_space<vmem>>, vector<128x512xbf16>
    %cst_5 = arith.constant dense<0.000000e+00> : vector<8x512xf32>
    %6 = tpu.matmul %4, %5, %cst_5 {dimension_numbers = #tpu.dot_dimension_numbers<[1], [0], [0], [1], [0, 0, 1, 1], [], []>} : vector<8x128xbf16>, vector<128x512xbf16>, vector<8x512xf32> -> vector<8x512xf32>
    %7 = arith.addf %3, %6 : vector<8x512xf32>
    %8 = vector.extract_strided_slice %7 {offsets = [0, 0], sizes = [8, 128], strides = [1, 1]} : vector<8x512xf32> to vector<8x128xf32>
    %9 = arith.negf %8 : vector<8x128xf32>
    %10 = math.exp %9 : vector<8x128xf32>
    %cst_6 = arith.constant 1.000000e+00 : f32
    %11 = vector.broadcast %cst_6 : f32 to vector<8x128xf32>
    %12 = arith.addf %11, %10 : vector<8x128xf32>
    %13 = arith.divf %11, %12 : vector<8x128xf32>
    %14 = vector.extract_strided_slice %7 {offsets = [0, 128], sizes = [8, 128], strides = [1, 1]} : vector<8x512xf32> to vector<8x128xf32>
    %15 = arith.negf %14 : vector<8x128xf32>
    %16 = math.exp %15 : vector<8x128xf32>
    %cst_7 = arith.constant 1.000000e+00 : f32
    %17 = vector.broadcast %cst_7 : f32 to vector<8x128xf32>
    %18 = arith.addf %17, %16 : vector<8x128xf32>
    %19 = arith.divf %17, %18 : vector<8x128xf32>
    %20 = vector.extract_strided_slice %7 {offsets = [0, 256], sizes = [8, 128], strides = [1, 1]} : vector<8x512xf32> to vector<8x128xf32>
    %21 = math.tanh %20 : vector<8x128xf32>
    %22 = vector.extract_strided_slice %7 {offsets = [0, 384], sizes = [8, 128], strides = [1, 1]} : vector<8x512xf32> to vector<8x128xf32>
    %23 = arith.negf %22 : vector<8x128xf32>
    %24 = math.exp %23 : vector<8x128xf32>
    %cst_8 = arith.constant 1.000000e+00 : f32
    %25 = vector.broadcast %cst_8 : f32 to vector<8x128xf32>
    %26 = arith.addf %25, %24 : vector<8x128xf32>
    %27 = arith.divf %25, %26 : vector<8x128xf32>
    %28 = arith.mulf %19, %1 : vector<8x128xf32>
    %29 = arith.mulf %13, %21 : vector<8x128xf32>
    %30 = arith.addf %28, %29 : vector<8x128xf32>
    %31 = math.tanh %30 : vector<8x128xf32>
    %32 = arith.mulf %27, %31 : vector<8x128xf32>
    %c1 = arith.constant 1 : index
    %c0_9 = arith.constant 0 : index
    %c0_10 = arith.constant 0 : index
    %33 = vector.load %arg1[%c1, %c0_9, %c0_10] : memref<8x8x512xf32, #tpu.memory_space<vmem>>, vector<1x8x512xf32>
    %34 = vector.shape_cast %33 : vector<1x8x512xf32> to vector<8x512xf32>
    %35 = arith.truncf %32 : vector<8x128xf32> to vector<8x128xbf16>
    %c0_11 = arith.constant 0 : index
    %c0_12 = arith.constant 0 : index
    %36 = vector.load %arg2[%c0_11, %c0_12] : memref<128x512xbf16, #tpu.memory_space<vmem>>, vector<128x512xbf16>
    %cst_13 = arith.constant dense<0.000000e+00> : vector<8x512xf32>
    %37 = tpu.matmul %35, %36, %cst_13 {dimension_numbers = #tpu.dot_dimension_numbers<[1], [0], [0], [1], [0, 0, 1, 1], [], []>} : vector<8x128xbf16>, vector<128x512xbf16>, vector<8x512xf32> -> vector<8x512xf32>
    %38 = arith.addf %34, %37 : vector<8x512xf32>
    %39 = vector.extract_strided_slice %38 {offsets = [0, 0], sizes = [8, 128], strides = [1, 1]} : vector<8x512xf32> to vector<8x128xf32>
    %40 = arith.negf %39 : vector<8x128xf32>
    %41 = math.exp %40 : vector<8x128xf32>
    %cst_14 = arith.constant 1.000000e+00 : f32
    %42 = vector.broadcast %cst_14 : f32 to vector<8x128xf32>
    %43 = arith.addf %42, %41 : vector<8x128xf32>
    %44 = arith.divf %42, %43 : vector<8x128xf32>
    %45 = vector.extract_strided_slice %38 {offsets = [0, 128], sizes = [8, 128], strides = [1, 1]} : vector<8x512xf32> to vector<8x128xf32>
    %46 = arith.negf %45 : vector<8x128xf32>
    %47 = math.exp %46 : vector<8x128xf32>
    %cst_15 = arith.constant 1.000000e+00 : f32
    %48 = vector.broadcast %cst_15 : f32 to vector<8x128xf32>
    %49 = arith.addf %48, %47 : vector<8x128xf32>
    %50 = arith.divf %48, %49 : vector<8x128xf32>
    %51 = vector.extract_strided_slice %38 {offsets = [0, 256], sizes = [8, 128], strides = [1, 1]} : vector<8x512xf32> to vector<8x128xf32>
    %52 = math.tanh %51 : vector<8x128xf32>
    %53 = vector.extract_strided_slice %38 {offsets = [0, 384], sizes = [8, 128], strides = [1, 1]} : vector<8x512xf32> to vector<8x128xf32>
    %54 = arith.negf %53 : vector<8x128xf32>
    %55 = math.exp %54 : vector<8x128xf32>
    %cst_16 = arith.constant 1.000000e+00 : f32
    %56 = vector.broadcast %cst_16 : f32 to vector<8x128xf32>
    %57 = arith.addf %56, %55 : vector<8x128xf32>
    %58 = arith.divf %56, %57 : vector<8x128xf32>
    %59 = arith.mulf %50, %30 : vector<8x128xf32>
    %60 = arith.mulf %44, %52 : vector<8x128xf32>
    %61 = arith.addf %59, %60 : vector<8x128xf32>
    %62 = math.tanh %61 : vector<8x128xf32>
    %63 = arith.mulf %58, %62 : vector<8x128xf32>
    %c2 = arith.constant 2 : index
    %c0_17 = arith.constant 0 : index
    %c0_18 = arith.constant 0 : index
    %64 = vector.load %arg1[%c2, %c0_17, %c0_18] : memref<8x8x512xf32, #tpu.memory_space<vmem>>, vector<1x8x512xf32>
    %65 = vector.shape_cast %64 : vector<1x8x512xf32> to vector<8x512xf32>
    %66 = arith.truncf %63 : vector<8x128xf32> to vector<8x128xbf16>
    %c0_19 = arith.constant 0 : index
    %c0_20 = arith.constant 0 : index
    %67 = vector.load %arg2[%c0_19, %c0_20] : memref<128x512xbf16, #tpu.memory_space<vmem>>, vector<128x512xbf16>
    %cst_21 = arith.constant dense<0.000000e+00> : vector<8x512xf32>
    %68 = tpu.matmul %66, %67, %cst_21 {dimension_numbers = #tpu.dot_dimension_numbers<[1], [0], [0], [1], [0, 0, 1, 1], [], []>} : vector<8x128xbf16>, vector<128x512xbf16>, vector<8x512xf32> -> vector<8x512xf32>
    %69 = arith.addf %65, %68 : vector<8x512xf32>
    %70 = vector.extract_strided_slice %69 {offsets = [0, 0], sizes = [8, 128], strides = [1, 1]} : vector<8x512xf32> to vector<8x128xf32>
    %71 = arith.negf %70 : vector<8x128xf32>
    %72 = math.exp %71 : vector<8x128xf32>
    %cst_22 = arith.constant 1.000000e+00 : f32
    %73 = vector.broadcast %cst_22 : f32 to vector<8x128xf32>
    %74 = arith.addf %73, %72 : vector<8x128xf32>
    %75 = arith.divf %73, %74 : vector<8x128xf32>
    %76 = vector.extract_strided_slice %69 {offsets = [0, 128], sizes = [8, 128], strides = [1, 1]} : vector<8x512xf32> to vector<8x128xf32>
    %77 = arith.negf %76 : vector<8x128xf32>
    %78 = math.exp %77 : vector<8x128xf32>
    %cst_23 = arith.constant 1.000000e+00 : f32
    %79 = vector.broadcast %cst_23 : f32 to vector<8x128xf32>
    %80 = arith.addf %79, %78 : vector<8x128xf32>
    %81 = arith.divf %79, %80 : vector<8x128xf32>
    %82 = vector.extract_strided_slice %69 {offsets = [0, 256], sizes = [8, 128], strides = [1, 1]} : vector<8x512xf32> to vector<8x128xf32>
    %83 = math.tanh %82 : vector<8x128xf32>
    %84 = vector.extract_strided_slice %69 {offsets = [0, 384], sizes = [8, 128], strides = [1, 1]} : vector<8x512xf32> to vector<8x128xf32>
    %85 = arith.negf %84 : vector<8x128xf32>
    %86 = math.exp %85 : vector<8x128xf32>
    %cst_24 = arith.constant 1.000000e+00 : f32
    %87 = vector.broadcast %cst_24 : f32 to vector<8x128xf32>
    %88 = arith.addf %87, %86 : vector<8x128xf32>
    %89 = arith.divf %87, %88 : vector<8x128xf32>
    %90 = arith.mulf %81, %61 : vector<8x128xf32>
    %91 = arith.mulf %75, %83 : vector<8x128xf32>
    %92 = arith.addf %90, %91 : vector<8x128xf32>
    %93 = math.tanh %92 : vector<8x128xf32>
    %94 = arith.mulf %89, %93 : vector<8x128xf32>
    %c3 = arith.constant 3 : index
    %c0_25 = arith.constant 0 : index
    %c0_26 = arith.constant 0 : index
    %95 = vector.load %arg1[%c3, %c0_25, %c0_26] : memref<8x8x512xf32, #tpu.memory_space<vmem>>, vector<1x8x512xf32>
    %96 = vector.shape_cast %95 : vector<1x8x512xf32> to vector<8x512xf32>
    %97 = arith.truncf %94 : vector<8x128xf32> to vector<8x128xbf16>
    %c0_27 = arith.constant 0 : index
    %c0_28 = arith.constant 0 : index
    %98 = vector.load %arg2[%c0_27, %c0_28] : memref<128x512xbf16, #tpu.memory_space<vmem>>, vector<128x512xbf16>
    %cst_29 = arith.constant dense<0.000000e+00> : vector<8x512xf32>
    %99 = tpu.matmul %97, %98, %cst_29 {dimension_numbers = #tpu.dot_dimension_numbers<[1], [0], [0], [1], [0, 0, 1, 1], [], []>} : vector<8x128xbf16>, vector<128x512xbf16>, vector<8x512xf32> -> vector<8x512xf32>
    %100 = arith.addf %96, %99 : vector<8x512xf32>
    %101 = vector.extract_strided_slice %100 {offsets = [0, 0], sizes = [8, 128], strides = [1, 1]} : vector<8x512xf32> to vector<8x128xf32>
    %102 = arith.negf %101 : vector<8x128xf32>
    %103 = math.exp %102 : vector<8x128xf32>
    %cst_30 = arith.constant 1.000000e+00 : f32
    %104 = vector.broadcast %cst_30 : f32 to vector<8x128xf32>
    %105 = arith.addf %104, %103 : vector<8x128xf32>
    %106 = arith.divf %104, %105 : vector<8x128xf32>
    %107 = vector.extract_strided_slice %100 {offsets = [0, 128], sizes = [8, 128], strides = [1, 1]} : vector<8x512xf32> to vector<8x128xf32>
    %108 = arith.negf %107 : vector<8x128xf32>
    %109 = math.exp %108 : vector<8x128xf32>
    %cst_31 = arith.constant 1.000000e+00 : f32
    %110 = vector.broadcast %cst_31 : f32 to vector<8x128xf32>
    %111 = arith.addf %110, %109 : vector<8x128xf32>
    %112 = arith.divf %110, %111 : vector<8x128xf32>
    %113 = vector.extract_strided_slice %100 {offsets = [0, 256], sizes = [8, 128], strides = [1, 1]} : vector<8x512xf32> to vector<8x128xf32>
    %114 = math.tanh %113 : vector<8x128xf32>
    %115 = vector.extract_strided_slice %100 {offsets = [0, 384], sizes = [8, 128], strides = [1, 1]} : vector<8x512xf32> to vector<8x128xf32>
    %116 = arith.negf %115 : vector<8x128xf32>
    %117 = math.exp %116 : vector<8x128xf32>
    %cst_32 = arith.constant 1.000000e+00 : f32
    %118 = vector.broadcast %cst_32 : f32 to vector<8x128xf32>
    %119 = arith.addf %118, %117 : vector<8x128xf32>
    %120 = arith.divf %118, %119 : vector<8x128xf32>
    %121 = arith.mulf %112, %92 : vector<8x128xf32>
    %122 = arith.mulf %106, %114 : vector<8x128xf32>
    %123 = arith.addf %121, %122 : vector<8x128xf32>
    %124 = math.tanh %123 : vector<8x128xf32>
    %125 = arith.mulf %120, %124 : vector<8x128xf32>
    %c4 = arith.constant 4 : index
    %c0_33 = arith.constant 0 : index
    %c0_34 = arith.constant 0 : index
    %126 = vector.load %arg1[%c4, %c0_33, %c0_34] : memref<8x8x512xf32, #tpu.memory_space<vmem>>, vector<1x8x512xf32>
    %127 = vector.shape_cast %126 : vector<1x8x512xf32> to vector<8x512xf32>
    %128 = arith.truncf %125 : vector<8x128xf32> to vector<8x128xbf16>
    %c0_35 = arith.constant 0 : index
    %c0_36 = arith.constant 0 : index
    %129 = vector.load %arg2[%c0_35, %c0_36] : memref<128x512xbf16, #tpu.memory_space<vmem>>, vector<128x512xbf16>
    %cst_37 = arith.constant dense<0.000000e+00> : vector<8x512xf32>
    %130 = tpu.matmul %128, %129, %cst_37 {dimension_numbers = #tpu.dot_dimension_numbers<[1], [0], [0], [1], [0, 0, 1, 1], [], []>} : vector<8x128xbf16>, vector<128x512xbf16>, vector<8x512xf32> -> vector<8x512xf32>
    %131 = arith.addf %127, %130 : vector<8x512xf32>
    %132 = vector.extract_strided_slice %131 {offsets = [0, 0], sizes = [8, 128], strides = [1, 1]} : vector<8x512xf32> to vector<8x128xf32>
    %133 = arith.negf %132 : vector<8x128xf32>
    %134 = math.exp %133 : vector<8x128xf32>
    %cst_38 = arith.constant 1.000000e+00 : f32
    %135 = vector.broadcast %cst_38 : f32 to vector<8x128xf32>
    %136 = arith.addf %135, %134 : vector<8x128xf32>
    %137 = arith.divf %135, %136 : vector<8x128xf32>
    %138 = vector.extract_strided_slice %131 {offsets = [0, 128], sizes = [8, 128], strides = [1, 1]} : vector<8x512xf32> to vector<8x128xf32>
    %139 = arith.negf %138 : vector<8x128xf32>
    %140 = math.exp %139 : vector<8x128xf32>
    %cst_39 = arith.constant 1.000000e+00 : f32
    %141 = vector.broadcast %cst_39 : f32 to vector<8x128xf32>
    %142 = arith.addf %141, %140 : vector<8x128xf32>
    %143 = arith.divf %141, %142 : vector<8x128xf32>
    %144 = vector.extract_strided_slice %131 {offsets = [0, 256], sizes = [8, 128], strides = [1, 1]} : vector<8x512xf32> to vector<8x128xf32>
    %145 = math.tanh %144 : vector<8x128xf32>
    %146 = vector.extract_strided_slice %131 {offsets = [0, 384], sizes = [8, 128], strides = [1, 1]} : vector<8x512xf32> to vector<8x128xf32>
    %147 = arith.negf %146 : vector<8x128xf32>
    %148 = math.exp %147 : vector<8x128xf32>
    %cst_40 = arith.constant 1.000000e+00 : f32
    %149 = vector.broadcast %cst_40 : f32 to vector<8x128xf32>
    %150 = arith.addf %149, %148 : vector<8x128xf32>
    %151 = arith.divf %149, %150 : vector<8x128xf32>
    %152 = arith.mulf %143, %123 : vector<8x128xf32>
    %153 = arith.mulf %137, %145 : vector<8x128xf32>
    %154 = arith.addf %152, %153 : vector<8x128xf32>
    %155 = math.tanh %154 : vector<8x128xf32>
    %156 = arith.mulf %151, %155 : vector<8x128xf32>
    %c5 = arith.constant 5 : index
    %c0_41 = arith.constant 0 : index
    %c0_42 = arith.constant 0 : index
    %157 = vector.load %arg1[%c5, %c0_41, %c0_42] : memref<8x8x512xf32, #tpu.memory_space<vmem>>, vector<1x8x512xf32>
    %158 = vector.shape_cast %157 : vector<1x8x512xf32> to vector<8x512xf32>
    %159 = arith.truncf %156 : vector<8x128xf32> to vector<8x128xbf16>
    %c0_43 = arith.constant 0 : index
    %c0_44 = arith.constant 0 : index
    %160 = vector.load %arg2[%c0_43, %c0_44] : memref<128x512xbf16, #tpu.memory_space<vmem>>, vector<128x512xbf16>
    %cst_45 = arith.constant dense<0.000000e+00> : vector<8x512xf32>
    %161 = tpu.matmul %159, %160, %cst_45 {dimension_numbers = #tpu.dot_dimension_numbers<[1], [0], [0], [1], [0, 0, 1, 1], [], []>} : vector<8x128xbf16>, vector<128x512xbf16>, vector<8x512xf32> -> vector<8x512xf32>
    %162 = arith.addf %158, %161 : vector<8x512xf32>
    %163 = vector.extract_strided_slice %162 {offsets = [0, 0], sizes = [8, 128], strides = [1, 1]} : vector<8x512xf32> to vector<8x128xf32>
    %164 = arith.negf %163 : vector<8x128xf32>
    %165 = math.exp %164 : vector<8x128xf32>
    %cst_46 = arith.constant 1.000000e+00 : f32
    %166 = vector.broadcast %cst_46 : f32 to vector<8x128xf32>
    %167 = arith.addf %166, %165 : vector<8x128xf32>
    %168 = arith.divf %166, %167 : vector<8x128xf32>
    %169 = vector.extract_strided_slice %162 {offsets = [0, 128], sizes = [8, 128], strides = [1, 1]} : vector<8x512xf32> to vector<8x128xf32>
    %170 = arith.negf %169 : vector<8x128xf32>
    %171 = math.exp %170 : vector<8x128xf32>
    %cst_47 = arith.constant 1.000000e+00 : f32
    %172 = vector.broadcast %cst_47 : f32 to vector<8x128xf32>
    %173 = arith.addf %172, %171 : vector<8x128xf32>
    %174 = arith.divf %172, %173 : vector<8x128xf32>
    %175 = vector.extract_strided_slice %162 {offsets = [0, 256], sizes = [8, 128], strides = [1, 1]} : vector<8x512xf32> to vector<8x128xf32>
    %176 = math.tanh %175 : vector<8x128xf32>
    %177 = vector.extract_strided_slice %162 {offsets = [0, 384], sizes = [8, 128], strides = [1, 1]} : vector<8x512xf32> to vector<8x128xf32>
    %178 = arith.negf %177 : vector<8x128xf32>
    %179 = math.exp %178 : vector<8x128xf32>
    %cst_48 = arith.constant 1.000000e+00 : f32
    %180 = vector.broadcast %cst_48 : f32 to vector<8x128xf32>
    %181 = arith.addf %180, %179 : vector<8x128xf32>
    %182 = arith.divf %180, %181 : vector<8x128xf32>
    %183 = arith.mulf %174, %154 : vector<8x128xf32>
    %184 = arith.mulf %168, %176 : vector<8x128xf32>
    %185 = arith.addf %183, %184 : vector<8x128xf32>
    %186 = math.tanh %185 : vector<8x128xf32>
    %187 = arith.mulf %182, %186 : vector<8x128xf32>
    %c6 = arith.constant 6 : index
    %c0_49 = arith.constant 0 : index
    %c0_50 = arith.constant 0 : index
    %188 = vector.load %arg1[%c6, %c0_49, %c0_50] : memref<8x8x512xf32, #tpu.memory_space<vmem>>, vector<1x8x512xf32>
    %189 = vector.shape_cast %188 : vector<1x8x512xf32> to vector<8x512xf32>
    %190 = arith.truncf %187 : vector<8x128xf32> to vector<8x128xbf16>
    %c0_51 = arith.constant 0 : index
    %c0_52 = arith.constant 0 : index
    %191 = vector.load %arg2[%c0_51, %c0_52] : memref<128x512xbf16, #tpu.memory_space<vmem>>, vector<128x512xbf16>
    %cst_53 = arith.constant dense<0.000000e+00> : vector<8x512xf32>
    %192 = tpu.matmul %190, %191, %cst_53 {dimension_numbers = #tpu.dot_dimension_numbers<[1], [0], [0], [1], [0, 0, 1, 1], [], []>} : vector<8x128xbf16>, vector<128x512xbf16>, vector<8x512xf32> -> vector<8x512xf32>
    %193 = arith.addf %189, %192 : vector<8x512xf32>
    %194 = vector.extract_strided_slice %193 {offsets = [0, 0], sizes = [8, 128], strides = [1, 1]} : vector<8x512xf32> to vector<8x128xf32>
    %195 = arith.negf %194 : vector<8x128xf32>
    %196 = math.exp %195 : vector<8x128xf32>
    %cst_54 = arith.constant 1.000000e+00 : f32
    %197 = vector.broadcast %cst_54 : f32 to vector<8x128xf32>
    %198 = arith.addf %197, %196 : vector<8x128xf32>
    %199 = arith.divf %197, %198 : vector<8x128xf32>
    %200 = vector.extract_strided_slice %193 {offsets = [0, 128], sizes = [8, 128], strides = [1, 1]} : vector<8x512xf32> to vector<8x128xf32>
    %201 = arith.negf %200 : vector<8x128xf32>
    %202 = math.exp %201 : vector<8x128xf32>
    %cst_55 = arith.constant 1.000000e+00 : f32
    %203 = vector.broadcast %cst_55 : f32 to vector<8x128xf32>
    %204 = arith.addf %203, %202 : vector<8x128xf32>
    %205 = arith.divf %203, %204 : vector<8x128xf32>
    %206 = vector.extract_strided_slice %193 {offsets = [0, 256], sizes = [8, 128], strides = [1, 1]} : vector<8x512xf32> to vector<8x128xf32>
    %207 = math.tanh %206 : vector<8x128xf32>
    %208 = vector.extract_strided_slice %193 {offsets = [0, 384], sizes = [8, 128], strides = [1, 1]} : vector<8x512xf32> to vector<8x128xf32>
    %209 = arith.negf %208 : vector<8x128xf32>
    %210 = math.exp %209 : vector<8x128xf32>
    %cst_56 = arith.constant 1.000000e+00 : f32
    %211 = vector.broadcast %cst_56 : f32 to vector<8x128xf32>
    %212 = arith.addf %211, %210 : vector<8x128xf32>
    %213 = arith.divf %211, %212 : vector<8x128xf32>
    %214 = arith.mulf %205, %185 : vector<8x128xf32>
    %215 = arith.mulf %199, %207 : vector<8x128xf32>
    %216 = arith.addf %214, %215 : vector<8x128xf32>
    %217 = math.tanh %216 : vector<8x128xf32>
    %218 = arith.mulf %213, %217 : vector<8x128xf32>
    %c7 = arith.constant 7 : index
    %c0_57 = arith.constant 0 : index
    %c0_58 = arith.constant 0 : index
    %219 = vector.load %arg1[%c7, %c0_57, %c0_58] : memref<8x8x512xf32, #tpu.memory_space<vmem>>, vector<1x8x512xf32>
    %220 = vector.shape_cast %219 : vector<1x8x512xf32> to vector<8x512xf32>
    %221 = arith.truncf %218 : vector<8x128xf32> to vector<8x128xbf16>
    %c0_59 = arith.constant 0 : index
    %c0_60 = arith.constant 0 : index
    %222 = vector.load %arg2[%c0_59, %c0_60] : memref<128x512xbf16, #tpu.memory_space<vmem>>, vector<128x512xbf16>
    %cst_61 = arith.constant dense<0.000000e+00> : vector<8x512xf32>
    %223 = tpu.matmul %221, %222, %cst_61 {dimension_numbers = #tpu.dot_dimension_numbers<[1], [0], [0], [1], [0, 0, 1, 1], [], []>} : vector<8x128xbf16>, vector<128x512xbf16>, vector<8x512xf32> -> vector<8x512xf32>
    %224 = arith.addf %220, %223 : vector<8x512xf32>
    %225 = vector.extract_strided_slice %224 {offsets = [0, 0], sizes = [8, 128], strides = [1, 1]} : vector<8x512xf32> to vector<8x128xf32>
    %226 = arith.negf %225 : vector<8x128xf32>
    %227 = math.exp %226 : vector<8x128xf32>
    %cst_62 = arith.constant 1.000000e+00 : f32
    %228 = vector.broadcast %cst_62 : f32 to vector<8x128xf32>
    %229 = arith.addf %228, %227 : vector<8x128xf32>
    %230 = arith.divf %228, %229 : vector<8x128xf32>
    %231 = vector.extract_strided_slice %224 {offsets = [0, 128], sizes = [8, 128], strides = [1, 1]} : vector<8x512xf32> to vector<8x128xf32>
    %232 = arith.negf %231 : vector<8x128xf32>
    %233 = math.exp %232 : vector<8x128xf32>
    %cst_63 = arith.constant 1.000000e+00 : f32
    %234 = vector.broadcast %cst_63 : f32 to vector<8x128xf32>
    %235 = arith.addf %234, %233 : vector<8x128xf32>
    %236 = arith.divf %234, %235 : vector<8x128xf32>
    %237 = vector.extract_strided_slice %224 {offsets = [0, 256], sizes = [8, 128], strides = [1, 1]} : vector<8x512xf32> to vector<8x128xf32>
    %238 = math.tanh %237 : vector<8x128xf32>
    %239 = vector.extract_strided_slice %224 {offsets = [0, 384], sizes = [8, 128], strides = [1, 1]} : vector<8x512xf32> to vector<8x128xf32>
    %240 = arith.negf %239 : vector<8x128xf32>
    %241 = math.exp %240 : vector<8x128xf32>
    %cst_64 = arith.constant 1.000000e+00 : f32
    %242 = vector.broadcast %cst_64 : f32 to vector<8x128xf32>
    %243 = arith.addf %242, %241 : vector<8x128xf32>
    %244 = arith.divf %242, %243 : vector<8x128xf32>
    %245 = arith.mulf %236, %216 : vector<8x128xf32>
    %246 = arith.mulf %230, %238 : vector<8x128xf32>
    %247 = arith.addf %245, %246 : vector<8x128xf32>
    %248 = math.tanh %247 : vector<8x128xf32>
    %249 = arith.mulf %244, %248 : vector<8x128xf32>
    %250 = arith.truncf %249 : vector<8x128xf32> to vector<8x128xbf16>
    %c0_65 = arith.constant 0 : index
    %c0_66 = arith.constant 0 : index
    %251 = vector.load %arg3[%c0_65, %c0_66] : memref<128x128xbf16, #tpu.memory_space<vmem>>, vector<128x128xbf16>
    %cst_67 = arith.constant dense<0.000000e+00> : vector<8x128xf32>
    %252 = tpu.matmul %250, %251, %cst_67 {dimension_numbers = #tpu.dot_dimension_numbers<[1], [0], [0], [1], [0, 0, 1, 1], [], []>} : vector<8x128xbf16>, vector<128x128xbf16>, vector<8x128xf32> -> vector<8x128xf32>
    %c0_68 = arith.constant 0 : index
    %c0_69 = arith.constant 0 : index
    %253 = vector.load %arg4[%c0_68, %c0_69] : memref<1x128xf32, #tpu.memory_space<vmem>>, vector<1x128xf32>
    %254 = vector.broadcast %253 : vector<1x128xf32> to vector<8x128xf32>
    %255 = arith.addf %252, %254 : vector<8x128xf32>
    %c0_70 = arith.constant 0 : index
    %c0_71 = arith.constant 0 : index
    %256 = vector.load %arg5[%c0_70, %c0_71] : memref<8x128xf32, #tpu.memory_space<vmem>>, vector<8x128xf32>
    tpu.vector_store %arg5[%c0_70, %c0_71], %255 {strides = array<i32>} : memref<8x128xf32, #tpu.memory_space<vmem>>, vector<8x128xf32>,
    return
  }
  func.func @transform_0(%arg0: i32) -> (i32, i32, i32) {
    %c0_i32 = arith.constant 0 : i32
    %c0_i32_0 = arith.constant 0 : i32
    %c0_i32_1 = arith.constant 0 : i32
    %c0_i32_2 = arith.constant 0 : i32
    return %c0_i32, %c0_i32_0, %c0_i32_1 : i32, i32, i32
  }
  func.func @transform_1(%arg0: i32) -> (i32, i32) {
    %c0_i32 = arith.constant 0 : i32
    %c0_i32_0 = arith.constant 0 : i32
    %c0_i32_1 = arith.constant 0 : i32
    return %c0_i32, %c0_i32_0 : i32, i32
  }
  func.func @transform_2(%arg0: i32) -> (i32, i32) {
    %c0_i32 = arith.constant 0 : i32
    %c0_i32_0 = arith.constant 0 : i32
    %c0_i32_1 = arith.constant 0 : i32
    return %c0_i32, %c0_i32_0 : i32, i32
  }
  func.func @transform_3(%arg0: i32) -> (i32, i32) {
    %c0_i32 = arith.constant 0 : i32
    %c0_i32_0 = arith.constant 0 : i32
    %c0_i32_1 = arith.constant 0 : i32
    return %c0_i32, %c0_i32_0 : i32, i32
  }
  func.func @transform_4(%arg0: i32) -> (i32, i32) {
    %c0_i32 = arith.constant 0 : i32
    %c0_i32_0 = arith.constant 0 : i32
    %c0_i32_1 = arith.constant 0 : i32
    return %c0_i32, %c0_i32_0 : i32, i32
  }
}

</mosaic_0001>

<llo_original>
// kernel: text_lstm_forward.1
$region0: #{text_lstm_forward.1}
  #allocation0 [shape = 'u32[]', space=smem, size = 0x4, offset = 0x4, fixed_abs, tag = 'smem constant byte address 0x4 - core index']
  #allocation1 [shape = 'u32[144,128]{1,0:T(1,128)}', space=vmem, size = 0x12000, scoped, tag = 'internal scratch']
  %s0 = inlined_call_operand.vmem [shape: f32[8,8,512], index: 0, kind: input, shape index: {}]
  %s1 = inlined_call_operand.vmem [shape: bf16[128,512], index: 1, kind: input, shape index: {}]
  %s2 = inlined_call_operand.vmem [shape: bf16[128,128], index: 2, kind: input, shape index: {}]
  %s3 = inlined_call_operand.vmem [shape: f32[1,128], index: 3, kind: input, shape index: {}]
  %s4 = inlined_call_operand.vmem [shape: f32[8,128], index: 4, kind: output, shape index: {}]
  %s5 = sld [smem:[#allocation0]]
  $region26: #{text_lstm_forward.1} parent=0
    _
  %s7 = ssub.s32 1, %s5
  %s8 = scalar_select 0, %s7, %s5
  // Predicated region
  $region2: #{text_lstm_forward.1} parent=0 // pred_check
    _
  $region3: #{text_lstm_forward.1} parent=0 // pred_check_branch
    %10 = sbr.rel (0) target = $region5
  $region4: #{text_lstm_forward.1} parent=0 // pred_region
    _
  $region5: #{text_lstm_forward.1} parent=0 // pred_fallthru
    _
  // Predicated region
  $region6: #{text_lstm_forward.1} parent=0 // pred_check
    _
  $region7: #{text_lstm_forward.1} parent=0 // pred_check_branch
    %12 = sbr.rel (0) target = $region9
  $region8: #{text_lstm_forward.1} parent=0 // pred_region
    _
  $region9: #{text_lstm_forward.1} parent=0 // pred_fallthru
    _
  // Predicated region
  $region10: #{text_lstm_forward.1} parent=0 // pred_check
    _
  $region11: #{text_lstm_forward.1} parent=0 // pred_check_branch
    %14 = sbr.rel (0) target = $region13
  $region12: #{text_lstm_forward.1} parent=0 // pred_region
    _
  $region13: #{text_lstm_forward.1} parent=0 // pred_fallthru
    _
  // Predicated region
  $region14: #{text_lstm_forward.1} parent=0 // pred_check
    _
  $region15: #{text_lstm_forward.1} parent=0 // pred_check_branch
    %16 = sbr.rel (0) target = $region17
  $region16: #{text_lstm_forward.1} parent=0 // pred_region
    _
  $region17: #{text_lstm_forward.1} parent=0 // pred_fallthru
    _
  %v18 = vld [vmem:[%s0] sm:$0xff]
  %v19 = vld [vmem:[%s0 + $0x8] sm:$0xff]
  %v20 = vld [vmem:[%s0 + $0x10] sm:$0xff]
  %v21 = vld [vmem:[%s0 + $0x18] sm:$0xff]
  %v22 = vld [vmem:[%s1] sm:$0xff]
  %v23 = vld [vmem:[%s1 + $0x8] sm:$0xff]
  %v24 = vld [vmem:[%s1 + $0x10] sm:$0xff]
  %v25 = vld [vmem:[%s1 + $0x18] sm:$0xff]
  %v26 = vld [vmem:[%s1 + $0x20] sm:$0xff]
  %v27 = vld [vmem:[%s1 + $0x28] sm:$0xff]
  %v28 = vld [vmem:[%s1 + $0x30] sm:$0xff]
  %v29 = vld [vmem:[%s1 + $0x38] sm:$0xff]
  %v30 = vld [vmem:[%s1 + $0x40] sm:$0xff]
  %v31 = vld [vmem:[%s1 + $0x48] sm:$0xff]
  %v32 = vld [vmem:[%s1 + $0x50] sm:$0xff]
  %v33 = vld [vmem:[%s1 + $0x58] sm:$0xff]
  %v34 = vld [vmem:[%s1 + $0x60] sm:$0xff]
  %v35 = vld [vmem:[%s1 + $0x68] sm:$0xff]
  %v36 = vld [vmem:[%s1 + $0x70] sm:$0xff]
  %v37 = vld [vmem:[%s1 + $0x78] sm:$0xff]
  %v38 = vld [vmem:[%s1 + $0x80] sm:$0xff]
  %v39 = vld [vmem:[%s1 + $0x88] sm:$0xff]
  %v40 = vld [vmem:[%s1 + $0x90] sm:$0xff]
  %v41 = vld [vmem:[%s1 + $0x98] sm:$0xff]
  %v42 = vld [vmem:[%s1 + $0xa0] sm:$0xff]
  %v43 = vld [vmem:[%s1 + $0xa8] sm:$0xff]
  %v44 = vld [vmem:[%s1 + $0xb0] sm:$0xff]
  %v45 = vld [vmem:[%s1 + $0xb8] sm:$0xff]
  %v46 = vld [vmem:[%s1 + $0xc0] sm:$0xff]
  %v47 = vld [vmem:[%s1 + $0xc8] sm:$0xff]
  %v48 = vld [vmem:[%s1 + $0xd0] sm:$0xff]
  %v49 = vld [vmem:[%s1 + $0xd8] sm:$0xff]
  %v50 = vld [vmem:[%s1 + $0xe0] sm:$0xff]
  %v51 = vld [vmem:[%s1 + $0xe8] sm:$0xff]
  %v52 = vld [vmem:[%s1 + $0xf0] sm:$0xff]
  %v53 = vld [vmem:[%s1 + $0xf8] sm:$0xff]
  %v86 = vunpack.c.l.b16 %v22
  %v87 = vunpack.c.h.b16 %v22
  %v88 = vunpack.c.l.b16 %v23
  %v89 = vunpack.c.h.b16 %v23
  %v90 = vunpack.c.l.b16 %v24
  %v91 = vunpack.c.h.b16 %v24
  %v92 = vunpack.c.l.b16 %v25
  %v93 = vunpack.c.h.b16 %v25
  %v94 = vunpack.c.l.b16 %v26
  %v95 = vunpack.c.h.b16 %v26
  %v96 = vunpack.c.l.b16 %v27
  %v97 = vunpack.c.h.b16 %v27
  %v98 = vunpack.c.l.b16 %v28
  %v99 = vunpack.c.h.b16 %v28
  %v100 = vunpack.c.l.b16 %v29
  %v101 = vunpack.c.h.b16 %v29
  %v102 = vunpack.c.l.b16 %v30
  %v103 = vunpack.c.h.b16 %v30
  %v104 = vunpack.c.l.b16 %v31
  %v105 = vunpack.c.h.b16 %v31
  %v106 = vunpack.c.l.b16 %v32
  %v107 = vunpack.c.h.b16 %v32
  %v108 = vunpack.c.l.b16 %v33
  %v109 = vunpack.c.h.b16 %v33
  %v110 = vunpack.c.l.b16 %v34
  %v111 = vunpack.c.h.b16 %v34
  %v112 = vunpack.c.l.b16 %v35
  %v113 = vunpack.c.h.b16 %v35
  %v114 = vunpack.c.l.b16 %v36
  %v115 = vunpack.c.h.b16 %v36
  %v116 = vunpack.c.l.b16 %v37
  %v117 = vunpack.c.h.b16 %v37
  %v118 = vunpack.c.l.b16 %v38
  %v119 = vunpack.c.h.b16 %v38
  %v120 = vunpack.c.l.b16 %v39
  %v121 = vunpack.c.h.b16 %v39
  %v122 = vunpack.c.l.b16 %v40
  %v123 = vunpack.c.h.b16 %v40
  %v124 = vunpack.c.l.b16 %v41
  %v125 = vunpack.c.h.b16 %v41
  %v126 = vunpack.c.l.b16 %v42
  %v127 = vunpack.c.h.b16 %v42
  %v128 = vunpack.c.l.b16 %v43
  %v129 = vunpack.c.h.b16 %v43
  %v130 = vunpack.c.l.b16 %v44
  %v131 = vunpack.c.h.b16 %v44
  %v132 = vunpack.c.l.b16 %v45
  %v133 = vunpack.c.h.b16 %v45
  %v134 = vunpack.c.l.b16 %v46
  %v135 = vunpack.c.h.b16 %v46
  %v136 = vunpack.c.l.b16 %v47
  %v137 = vunpack.c.h.b16 %v47
  %v138 = vunpack.c.l.b16 %v48
  %v139 = vunpack.c.h.b16 %v48
  %v140 = vunpack.c.l.b16 %v49
  %v141 = vunpack.c.h.b16 %v49
  %v142 = vunpack.c.l.b16 %v50
  %v143 = vunpack.c.h.b16 %v50
  %v144 = vunpack.c.l.b16 %v51
  %v145 = vunpack.c.h.b16 %v51
  %v146 = vunpack.c.l.b16 %v52
  %v147 = vunpack.c.h.b16 %v52
  %v148 = vunpack.c.l.b16 %v53
  %v149 = vunpack.c.h.b16 %v53
  %v150 = vpack.c.b16 %v90, %v86
  %v151 = vpack.c.b16 %v91, %v87
  %v152 = vpack.c.b16 %v92, %v88
  %v153 = vpack.c.b16 %v93, %v89
  %v154 = vpack.c.b16 %v98, %v94
  %v155 = vpack.c.b16 %v99, %v95
  %v156 = vpack.c.b16 %v100, %v96
  %v157 = vpack.c.b16 %v101, %v97
  %v158 = vpack.c.b16 %v106, %v102
  %v159 = vpack.c.b16 %v107, %v103
  %v160 = vpack.c.b16 %v108, %v104
  %v161 = vpack.c.b16 %v109, %v105
  %v162 = vpack.c.b16 %v114, %v110
  %v163 = vpack.c.b16 %v115, %v111
  %v164 = vpack.c.b16 %v116, %v112
  %v165 = vpack.c.b16 %v117, %v113
  %v166 = vpack.c.b16 %v122, %v118
  %v167 = vpack.c.b16 %v123, %v119
  %v168 = vpack.c.b16 %v124, %v120
  %v169 = vpack.c.b16 %v125, %v121
  %v170 = vpack.c.b16 %v130, %v126
  %v171 = vpack.c.b16 %v131, %v127
  %v172 = vpack.c.b16 %v132, %v128
  %v173 = vpack.c.b16 %v133, %v129
  %v174 = vpack.c.b16 %v138, %v134
  %v175 = vpack.c.b16 %v139, %v135
  %v176 = vpack.c.b16 %v140, %v136
  %v177 = vpack.c.b16 %v141, %v137
  %v178 = vpack.c.b16 %v146, %v142
  %v179 = vpack.c.b16 %v147, %v143
  %v180 = vpack.c.b16 %v148, %v144
  %v181 = vpack.c.b16 %v149, %v145
  %214 = vmatprep.subr.bf16.mxu0 %v151
  %215 = vmatpush1.bf16.msra.mxu0 %v150
  %216 = vmatprep.subr.bf16.mxu0 %v155
  %217 = vmatpush1.bf16.msra.mxu0 %v154
  %218 = vmatprep.subr.bf16.mxu0 %v159
  %219 = vmatpush1.bf16.msra.mxu0 %v158
  %220 = vmatprep.subr.bf16.mxu0 %v163
  %221 = vmatpush1.bf16.msra.mxu0 %v162
  %222 = vmatprep.subr.bf16.mxu0 %v167
  %223 = vmatpush1.bf16.msra.mxu0 %v166
  %224 = vmatprep.subr.bf16.mxu0 %v171
  %225 = vmatpush1.bf16.msra.mxu0 %v170
  %226 = vmatprep.subr.bf16.mxu0 %v175
  %227 = vmatpush1.bf16.msra.mxu0 %v174
  %228 = vmatprep.subr.bf16.mxu0 %v179
  %229 = vmatpush1.bf16.msra.mxu0 %v178
  %230 = vmatprep.subr.bf16.mxu0 0
  %231 = vmatpush1.bf16.msra.mxu0 0
  %232 = vmatprep.subr.bf16.mxu0 0
  %233 = vmatpush1.bf16.msra.mxu0 0
  %234 = vmatprep.subr.bf16.mxu0 0
  %235 = vmatpush1.bf16.msra.mxu0 0
  %236 = vmatprep.subr.bf16.mxu0 0
  %237 = vmatpush1.bf16.msra.mxu0 0
  %238 = vmatprep.subr.bf16.mxu0 0
  %239 = vmatpush1.bf16.msra.mxu0 0
  %240 = vmatprep.subr.bf16.mxu0 0
  %241 = vmatpush1.bf16.msra.mxu0 0
  %242 = vmatprep.subr.bf16.mxu0 0
  %243 = vmatpush1.bf16.msra.mxu0 0
  %244 = vmatprep.subr.bf16.mxu0 0
  %245 = vmatpush1.bf16.msra.mxu0 0
  %246 = vmatprep.mubr.bf16.mxu0 0
  %247 = vmatmul.mubr.bf16.gmra.mrb[0].mxu0 0
  %v248 = vpop.f32.mrb[0].mxu0
  %v249 = vadd.f32 0.0, %v248
  %v250 = vpop.f32.mrb[0].mxu0
  %v251 = vadd.f32 0.0, %v250
  %v252 = vpop.f32.mrb[0].mxu0
  %v253 = vpop.f32.mrb[0].mxu0
  %254 = vdwg.mxu0
  %255 = vmatprep.subr.bf16.mxu0 %v153
  %256 = vmatpush1.bf16.msra.mxu0 %v152
  %257 = vmatprep.subr.bf16.mxu0 %v157
  %258 = vmatpush1.bf16.msra.mxu0 %v156
  %259 = vmatprep.subr.bf16.mxu0 %v161
  %260 = vmatpush1.bf16.msra.mxu0 %v160
  %261 = vmatprep.subr.bf16.mxu0 %v165
  %262 = vmatpush1.bf16.msra.mxu0 %v164
  %263 = vmatprep.subr.bf16.mxu0 %v169
  %264 = vmatpush1.bf16.msra.mxu0 %v168
  %265 = vmatprep.subr.bf16.mxu0 %v173
  %266 = vmatpush1.bf16.msra.mxu0 %v172
  %267 = vmatprep.subr.bf16.mxu0 %v177
  %268 = vmatpush1.bf16.msra.mxu0 %v176
  %269 = vmatprep.subr.bf16.mxu0 %v181
  %270 = vmatpush1.bf16.msra.mxu0 %v180
  %271 = vmatprep.subr.bf16.mxu0 0
  %272 = vmatpush1.bf16.msra.mxu0 0
  %273 = vmatprep.subr.bf16.mxu0 0
  %274 = vmatpush1.bf16.msra.mxu0 0
  %275 = vmatprep.subr.bf16.mxu0 0
  %276 = vmatpush1.bf16.msra.mxu0 0
  %277 = vmatprep.subr.bf16.mxu0 0
  %278 = vmatpush1.bf16.msra.mxu0 0
  %279 = vmatprep.subr.bf16.mxu0 0
  %280 = vmatpush1.bf16.msra.mxu0 0
  %281 = vmatprep.subr.bf16.mxu0 0
  %282 = vmatpush1.bf16.msra.mxu0 0
  %283 = vmatprep.subr.bf16.mxu0 0
  %284 = vmatpush1.bf16.msra.mxu0 0
  %285 = vmatprep.subr.bf16.mxu0 0
  %286 = vmatpush1.bf16.msra.mxu0 0
  %287 = vmatprep.mubr.bf16.mxu0 0
  %288 = vmatmul.mubr.bf16.gmra.mrb[0].mxu0 0
  %v289 = vpop.f32.mrb[0].mxu0
  %v290 = vadd.f32 0.0, %v289
  %v291 = vpop.f32.mrb[0].mxu0
  %v292 = vadd.f32 0.0, %v291
  %v293 = vpop.f32.mrb[0].mxu0
  %v294 = vpop.f32.mrb[0].mxu0
  %295 = vdwg.mxu0
  %v296 = vadd.f32 %v18, %v249
  %v297 = vadd.f32 %v19, %v251
  %v298 = vadd.f32 %v20, %v290
  %v299 = vadd.f32 %v21, %v292
  %v300 = vxor.u32 %v296, 2147483648
  %v301 = vmul.f32 %v300, 1.442695
  %v302 = vpow.pop %v301
  %v303 = vadd.f32 %v302, 1.0
  %v304 = vrcp.pop %v303
  %v305 = vmul.f32 1.0, %v304
  %v306 = vxor.u32 %v297, 2147483648
  %v307 = vmul.f32 %v306, 1.442695
  %v308 = vpow.pop %v307
  %v309 = vadd.f32 %v308, 1.0
  %v310 = vrcp.pop %v309
  %v311 = vmul.f32 1.0, %v310
  %v312 = vtanh.pop %v298
  %v313 = vxor.u32 %v299, 2147483648
  %v314 = vmul.f32 %v313, 1.442695
  %v315 = vpow.pop %v314
  %v316 = vadd.f32 %v315, 1.0
  %v317 = vrcp.pop %v316
  %v318 = vmul.f32 1.0, %v317
  %v319 = vmul.f32 %v311, 0.0
  %v320 = vmul.f32 %v305, %v312
  %v321 = vadd.f32 %v319, %v320
  %v322 = vtanh.pop %v321
  %v323 = vmul.f32 %v318, %v322
  %s324 = scalar_lea.vmem %s0, 32
  %v325 = vld [vmem:[%s324] sm:$0xff]
  %v326 = vld [vmem:[%s324 + $0x8] sm:$0xff]
  %v327 = vld [vmem:[%s324 + $0x10] sm:$0xff]
  %v328 = vld [vmem:[%s324 + $0x18] sm:$0xff]
  %v329 = vpack.c.bf16 %v323, %v323
  %330 = vmatprep.subr.bf16.mxu0 %v151
  %331 = vmatpush1.bf16.msra.mxu0 %v150
  %332 = vmatprep.subr.bf16.mxu0 %v155
  %333 = vmatpush1.bf16.msra.mxu0 %v154
  %334 = vmatprep.subr.bf16.mxu0 %v159
  %335 = vmatpush1.bf16.msra.mxu0 %v158
  %336 = vmatprep.subr.bf16.mxu0 %v163
  %337 = vmatpush1.bf16.msra.mxu0 %v162
  %338 = vmatprep.subr.bf16.mxu0 %v167
  %339 = vmatpush1.bf16.msra.mxu0 %v166
  %340 = vmatprep.subr.bf16.mxu0 %v171
  %341 = vmatpush1.bf16.msra.mxu0 %v170
  %342 = vmatprep.subr.bf16.mxu0 %v175
  %343 = vmatpush1.bf16.msra.mxu0 %v174
  %344 = vmatprep.subr.bf16.mxu0 %v179
  %345 = vmatpush1.bf16.msra.mxu0 %v178
  %346 = vmatprep.subr.bf16.mxu0 0
  %347 = vmatpush1.bf16.msra.mxu0 0
  %348 = vmatprep.subr.bf16.mxu0 0
  %349 = vmatpush1.bf16.msra.mxu0 0
  %350 = vmatprep.subr.bf16.mxu0 0
  %351 = vmatpush1.bf16.msra.mxu0 0
  %352 = vmatprep.subr.bf16.mxu0 0
  %353 = vmatpush1.bf16.msra.mxu0 0
  %354 = vmatprep.subr.bf16.mxu0 0
  %355 = vmatpush1.bf16.msra.mxu0 0
  %356 = vmatprep.subr.bf16.mxu0 0
  %357 = vmatpush1.bf16.msra.mxu0 0
  %358 = vmatprep.subr.bf16.mxu0 0
  %359 = vmatpush1.bf16.msra.mxu0 0
  %360 = vmatprep.subr.bf16.mxu0 0
  %361 = vmatpush1.bf16.msra.mxu0 0
  %362 = vmatprep.mubr.bf16.mxu0 0
  %363 = vmatmul.mubr.bf16.gmra.mrb[0].mxu0 %v329
  %v364 = vpop.f32.mrb[0].mxu0
  %v365 = vadd.f32 0.0, %v364
  %v366 = vpop.f32.mrb[0].mxu0
  %v367 = vadd.f32 0.0, %v366
  %v368 = vpop.f32.mrb[0].mxu0
  %v369 = vpop.f32.mrb[0].mxu0
  %370 = vdwg.mxu0
  %371 = vmatprep.subr.bf16.mxu0 %v153
  %372 = vmatpush1.bf16.msra.mxu0 %v152
  %373 = vmatprep.subr.bf16.mxu0 %v157
  %374 = vmatpush1.bf16.msra.mxu0 %v156
  %375 = vmatprep.subr.bf16.mxu0 %v161
  %376 = vmatpush1.bf16.msra.mxu0 %v160
  %377 = vmatprep.subr.bf16.mxu0 %v165
  %378 = vmatpush1.bf16.msra.mxu0 %v164
  %379 = vmatprep.subr.bf16.mxu0 %v169
  %380 = vmatpush1.bf16.msra.mxu0 %v168
  %381 = vmatprep.subr.bf16.mxu0 %v173
  %382 = vmatpush1.bf16.msra.mxu0 %v172
  %383 = vmatprep.subr.bf16.mxu0 %v177
  %384 = vmatpush1.bf16.msra.mxu0 %v176
  %385 = vmatprep.subr.bf16.mxu0 %v181
  %386 = vmatpush1.bf16.msra.mxu0 %v180
  %387 = vmatprep.subr.bf16.mxu0 0
  %388 = vmatpush1.bf16.msra.mxu0 0
  %389 = vmatprep.subr.bf16.mxu0 0
  %390 = vmatpush1.bf16.msra.mxu0 0
  %391 = vmatprep.subr.bf16.mxu0 0
  %392 = vmatpush1.bf16.msra.mxu0 0
  %393 = vmatprep.subr.bf16.mxu0 0
  %394 = vmatpush1.bf16.msra.mxu0 0
  %395 = vmatprep.subr.bf16.mxu0 0
  %396 = vmatpush1.bf16.msra.mxu0 0
  %397 = vmatprep.subr.bf16.mxu0 0
  %398 = vmatpush1.bf16.msra.mxu0 0
  %399 = vmatprep.subr.bf16.mxu0 0
  %400 = vmatpush1.bf16.msra.mxu0 0
  %401 = vmatprep.subr.bf16.mxu0 0
  %402 = vmatpush1.bf16.msra.mxu0 0
  %403 = vmatprep.mubr.bf16.mxu0 0
  %404 = vmatmul.mubr.bf16.gmra.mrb[0].mxu0 %v329
  %v405 = vpop.f32.mrb[0].mxu0
  %v406 = vadd.f32 0.0, %v405
  %v407 = vpop.f32.mrb[0].mxu0
  %v408 = vadd.f32 0.0, %v407
  %v409 = vpop.f32.mrb[0].mxu0
  %v410 = vpop.f32.mrb[0].mxu0
  %411 = vdwg.mxu0
  %v412 = vadd.f32 %v325, %v365
  %v413 = vadd.f32 %v326, %v367
  %v414 = vadd.f32 %v327, %v406
  %v415 = vadd.f32 %v328, %v408
  %v416 = vxor.u32 %v412, 2147483648
  %v417 = vmul.f32 %v416, 1.442695
  %v418 = vpow.pop %v417
  %v419 = vadd.f32 %v418, 1.0
  %v420 = vrcp.pop %v419
  %v421 = vmul.f32 1.0, %v420
  %v422 = vxor.u32 %v413, 2147483648
  %v423 = vmul.f32 %v422, 1.442695
  %v424 = vpow.pop %v423
  %v425 = vadd.f32 %v424, 1.0
  %v426 = vrcp.pop %v425
  %v427 = vmul.f32 1.0, %v426
  %v428 = vtanh.pop %v414
  %v429 = vxor.u32 %v415, 2147483648
  %v430 = vmul.f32 %v429, 1.442695
  %v431 = vpow.pop %v430
  %v432 = vadd.f32 %v431, 1.0
  %v433 = vrcp.pop %v432
  %v434 = vmul.f32 1.0, %v433
  %v435 = vmul.f32 %v427, %v321
  %v436 = vmul.f32 %v421, %v428
  %v437 = vadd.f32 %v435, %v436
  %v438 = vtanh.pop %v437
  %v439 = vmul.f32 %v434, %v438
  %s440 = scalar_lea.vmem %s0, 64
  %v441 = vld [vmem:[%s440] sm:$0xff]
  %v442 = vld [vmem:[%s440 + $0x8] sm:$0xff]
  %v443 = vld [vmem:[%s440 + $0x10] sm:$0xff]
  %v444 = vld [vmem:[%s440 + $0x18] sm:$0xff]
  %v445 = vpack.c.bf16 %v439, %v439
  %446 = vmatprep.subr.bf16.mxu0 %v151
  %447 = vmatpush1.bf16.msra.mxu0 %v150
  %448 = vmatprep.subr.bf16.mxu0 %v155
  %449 = vmatpush1.bf16.msra.mxu0 %v154
  %450 = vmatprep.subr.bf16.mxu0 %v159
  %451 = vmatpush1.bf16.msra.mxu0 %v158
  %452 = vmatprep.subr.bf16.mxu0 %v163
  %453 = vmatpush1.bf16.msra.mxu0 %v162
  %454 = vmatprep.subr.bf16.mxu0 %v167
  %455 = vmatpush1.bf16.msra.mxu0 %v166
  %456 = vmatprep.subr.bf16.mxu0 %v171
  %457 = vmatpush1.bf16.msra.mxu0 %v170
  %458 = vmatprep.subr.bf16.mxu0 %v175
  %459 = vmatpush1.bf16.msra.mxu0 %v174
  %460 = vmatprep.subr.bf16.mxu0 %v179
  %461 = vmatpush1.bf16.msra.mxu0 %v178
  %462 = vmatprep.subr.bf16.mxu0 0
  %463 = vmatpush1.bf16.msra.mxu0 0
  %464 = vmatprep.subr.bf16.mxu0 0
  %465 = vmatpush1.bf16.msra.mxu0 0
  %466 = vmatprep.subr.bf16.mxu0 0
  %467 = vmatpush1.bf16.msra.mxu0 0
  %468 = vmatprep.subr.bf16.mxu0 0
  %469 = vmatpush1.bf16.msra.mxu0 0
  %470 = vmatprep.subr.bf16.mxu0 0
  %471 = vmatpush1.bf16.msra.mxu0 0
  %472 = vmatprep.subr.bf16.mxu0 0
  %473 = vmatpush1.bf16.msra.mxu0 0
  %474 = vmatprep.subr.bf16.mxu0 0
  %475 = vmatpush1.bf16.msra.mxu0 0
  %476 = vmatprep.subr.bf16.mxu0 0
  %477 = vmatpush1.bf16.msra.mxu0 0
  %478 = vmatprep.mubr.bf16.mxu0 0
  %479 = vmatmul.mubr.bf16.gmra.mrb[0].mxu0 %v445
  %v480 = vpop.f32.mrb[0].mxu0
  %v481 = vadd.f32 0.0, %v480
  %v482 = vpop.f32.mrb[0].mxu0
  %v483 = vadd.f32 0.0, %v482
  %v484 = vpop.f32.mrb[0].mxu0
  %v485 = vpop.f32.mrb[0].mxu0
  %486 = vdwg.mxu0
  %487 = vmatprep.subr.bf16.mxu0 %v153
  %488 = vmatpush1.bf16.msra.mxu0 %v152
  %489 = vmatprep.subr.bf16.mxu0 %v157
  %490 = vmatpush1.bf16.msra.mxu0 %v156
  %491 = vmatprep.subr.bf16.mxu0 %v161
  %492 = vmatpush1.bf16.msra.mxu0 %v160
  %493 = vmatprep.subr.bf16.mxu0 %v165
  %494 = vmatpush1.bf16.msra.mxu0 %v164
  %495 = vmatprep.subr.bf16.mxu0 %v169
  %496 = vmatpush1.bf16.msra.mxu0 %v168
  %497 = vmatprep.subr.bf16.mxu0 %v173
  %498 = vmatpush1.bf16.msra.mxu0 %v172
  %499 = vmatprep.subr.bf16.mxu0 %v177
  %500 = vmatpush1.bf16.msra.mxu0 %v176
  %501 = vmatprep.subr.bf16.mxu0 %v181
  %502 = vmatpush1.bf16.msra.mxu0 %v180
  %503 = vmatprep.subr.bf16.mxu0 0
  %504 = vmatpush1.bf16.msra.mxu0 0
  %505 = vmatprep.subr.bf16.mxu0 0
  %506 = vmatpush1.bf16.msra.mxu0 0
  %507 = vmatprep.subr.bf16.mxu0 0
  %508 = vmatpush1.bf16.msra.mxu0 0
  %509 = vmatprep.subr.bf16.mxu0 0
  %510 = vmatpush1.bf16.msra.mxu0 0
  %511 = vmatprep.subr.bf16.mxu0 0
  %512 = vmatpush1.bf16.msra.mxu0 0
  %513 = vmatprep.subr.bf16.mxu0 0
  %514 = vmatpush1.bf16.msra.mxu0 0
  %515 = vmatprep.subr.bf16.mxu0 0
  %516 = vmatpush1.bf16.msra.mxu0 0
  %517 = vmatprep.subr.bf16.mxu0 0
  %518 = vmatpush1.bf16.msra.mxu0 0
  %519 = vmatprep.mubr.bf16.mxu0 0
  %520 = vmatmul.mubr.bf16.gmra.mrb[0].mxu0 %v445
  %v521 = vpop.f32.mrb[0].mxu0
  %v522 = vadd.f32 0.0, %v521
  %v523 = vpop.f32.mrb[0].mxu0
  %v524 = vadd.f32 0.0, %v523
  %v525 = vpop.f32.mrb[0].mxu0
  %v526 = vpop.f32.mrb[0].mxu0
  %527 = vdwg.mxu0
  %v528 = vadd.f32 %v441, %v481
  %v529 = vadd.f32 %v442, %v483
  %v530 = vadd.f32 %v443, %v522
  %v531 = vadd.f32 %v444, %v524
  %v532 = vxor.u32 %v528, 2147483648
  %v533 = vmul.f32 %v532, 1.442695
  %v534 = vpow.pop %v533
  %v535 = vadd.f32 %v534, 1.0
  %v536 = vrcp.pop %v535
  %v537 = vmul.f32 1.0, %v536
  %v538 = vxor.u32 %v529, 2147483648
  %v539 = vmul.f32 %v538, 1.442695
  %v540 = vpow.pop %v539
  %v541 = vadd.f32 %v540, 1.0
  %v542 = vrcp.pop %v541
  %v543 = vmul.f32 1.0, %v542
  %v544 = vtanh.pop %v530
  %v545 = vxor.u32 %v531, 2147483648
  %v546 = vmul.f32 %v545, 1.442695
  %v547 = vpow.pop %v546
  %v548 = vadd.f32 %v547, 1.0
  %v549 = vrcp.pop %v548
  %v550 = vmul.f32 1.0, %v549
  %v551 = vmul.f32 %v543, %v437
  %v552 = vmul.f32 %v537, %v544
  %v553 = vadd.f32 %v551, %v552
  %v554 = vtanh.pop %v553
  %v555 = vmul.f32 %v550, %v554
  %s556 = scalar_lea.vmem %s0, 96
  %v557 = vld [vmem:[%s556] sm:$0xff]
  %v558 = vld [vmem:[%s556 + $0x8] sm:$0xff]
  %v559 = vld [vmem:[%s556 + $0x10] sm:$0xff]
  %v560 = vld [vmem:[%s556 + $0x18] sm:$0xff]
  %v561 = vpack.c.bf16 %v555, %v555
  %562 = vmatprep.subr.bf16.mxu0 %v151
  %563 = vmatpush1.bf16.msra.mxu0 %v150
  %564 = vmatprep.subr.bf16.mxu0 %v155
  %565 = vmatpush1.bf16.msra.mxu0 %v154
  %566 = vmatprep.subr.bf16.mxu0 %v159
  %567 = vmatpush1.bf16.msra.mxu0 %v158
  %568 = vmatprep.subr.bf16.mxu0 %v163
  %569 = vmatpush1.bf16.msra.mxu0 %v162
  %570 = vmatprep.subr.bf16.mxu0 %v167
  %571 = vmatpush1.bf16.msra.mxu0 %v166
  %572 = vmatprep.subr.bf16.mxu0 %v171
  %573 = vmatpush1.bf16.msra.mxu0 %v170
  %574 = vmatprep.subr.bf16.mxu0 %v175
  %575 = vmatpush1.bf16.msra.mxu0 %v174
  %576 = vmatprep.subr.bf16.mxu0 %v179
  %577 = vmatpush1.bf16.msra.mxu0 %v178
  %578 = vmatprep.subr.bf16.mxu0 0
  %579 = vmatpush1.bf16.msra.mxu0 0
  %580 = vmatprep.subr.bf16.mxu0 0
  %581 = vmatpush1.bf16.msra.mxu0 0
  %582 = vmatprep.subr.bf16.mxu0 0
  %583 = vmatpush1.bf16.msra.mxu0 0
  %584 = vmatprep.subr.bf16.mxu0 0
  %585 = vmatpush1.bf16.msra.mxu0 0
  %586 = vmatprep.subr.bf16.mxu0 0
  %587 = vmatpush1.bf16.msra.mxu0 0
  %588 = vmatprep.subr.bf16.mxu0 0
  %589 = vmatpush1.bf16.msra.mxu0 0
  %590 = vmatprep.subr.bf16.mxu0 0
  %591 = vmatpush1.bf16.msra.mxu0 0
  %592 = vmatprep.subr.bf16.mxu0 0
  %593 = vmatpush1.bf16.msra.mxu0 0
  %594 = vmatprep.mubr.bf16.mxu0 0
  %595 = vmatmul.mubr.bf16.gmra.mrb[0].mxu0 %v561
  %v596 = vpop.f32.mrb[0].mxu0
  %v597 = vadd.f32 0.0, %v596
  %v598 = vpop.f32.mrb[0].mxu0
  %v599 = vadd.f32 0.0, %v598
  %v600 = vpop.f32.mrb[0].mxu0
  %v601 = vpop.f32.mrb[0].mxu0
  %602 = vdwg.mxu0
  %603 = vmatprep.subr.bf16.mxu0 %v153
  %604 = vmatpush1.bf16.msra.mxu0 %v152
  %605 = vmatprep.subr.bf16.mxu0 %v157
  %606 = vmatpush1.bf16.msra.mxu0 %v156
  %607 = vmatprep.subr.bf16.mxu0 %v161
  %608 = vmatpush1.bf16.msra.mxu0 %v160
  %609 = vmatprep.subr.bf16.mxu0 %v165
  %610 = vmatpush1.bf16.msra.mxu0 %v164
  %611 = vmatprep.subr.bf16.mxu0 %v169
  %612 = vmatpush1.bf16.msra.mxu0 %v168
  %613 = vmatprep.subr.bf16.mxu0 %v173
  %614 = vmatpush1.bf16.msra.mxu0 %v172
  %615 = vmatprep.subr.bf16.mxu0 %v177
  %616 = vmatpush1.bf16.msra.mxu0 %v176
  %617 = vmatprep.subr.bf16.mxu0 %v181
  %618 = vmatpush1.bf16.msra.mxu0 %v180
  %619 = vmatprep.subr.bf16.mxu0 0
  %620 = vmatpush1.bf16.msra.mxu0 0
  %621 = vmatprep.subr.bf16.mxu0 0
  %622 = vmatpush1.bf16.msra.mxu0 0
  %623 = vmatprep.subr.bf16.mxu0 0
  %624 = vmatpush1.bf16.msra.mxu0 0
  %625 = vmatprep.subr.bf16.mxu0 0
  %626 = vmatpush1.bf16.msra.mxu0 0
  %627 = vmatprep.subr.bf16.mxu0 0
  %628 = vmatpush1.bf16.msra.mxu0 0
  %629 = vmatprep.subr.bf16.mxu0 0
  %630 = vmatpush1.bf16.msra.mxu0 0
  %631 = vmatprep.subr.bf16.mxu0 0
  %632 = vmatpush1.bf16.msra.mxu0 0
  %633 = vmatprep.subr.bf16.mxu0 0
  %634 = vmatpush1.bf16.msra.mxu0 0
  %635 = vmatprep.mubr.bf16.mxu0 0
  %636 = vmatmul.mubr.bf16.gmra.mrb[0].mxu0 %v561
  %v637 = vpop.f32.mrb[0].mxu0
  %v638 = vadd.f32 0.0, %v637
  %v639 = vpop.f32.mrb[0].mxu0
  %v640 = vadd.f32 0.0, %v639
  %v641 = vpop.f32.mrb[0].mxu0
  %v642 = vpop.f32.mrb[0].mxu0
  %643 = vdwg.mxu0
  %v644 = vadd.f32 %v557, %v597
  %v645 = vadd.f32 %v558, %v599
  %v646 = vadd.f32 %v559, %v638
  %v647 = vadd.f32 %v560, %v640
  %v648 = vxor.u32 %v644, 2147483648
  %v649 = vmul.f32 %v648, 1.442695
  %v650 = vpow.pop %v649
  %v651 = vadd.f32 %v650, 1.0
  %v652 = vrcp.pop %v651
  %v653 = vmul.f32 1.0, %v652
  %v654 = vxor.u32 %v645, 2147483648
  %v655 = vmul.f32 %v654, 1.442695
  %v656 = vpow.pop %v655
  %v657 = vadd.f32 %v656, 1.0
  %v658 = vrcp.pop %v657
  %v659 = vmul.f32 1.0, %v658
  %v660 = vtanh.pop %v646
  %v661 = vxor.u32 %v647, 2147483648
  %v662 = vmul.f32 %v661, 1.442695
  %v663 = vpow.pop %v662
  %v664 = vadd.f32 %v663, 1.0
  %v665 = vrcp.pop %v664
  %v666 = vmul.f32 1.0, %v665
  %v667 = vmul.f32 %v659, %v553
  %v668 = vmul.f32 %v653, %v660
  %v669 = vadd.f32 %v667, %v668
  %v670 = vtanh.pop %v669
  %v671 = vmul.f32 %v666, %v670
  %s672 = scalar_lea.vmem %s0, 128
  %v673 = vld [vmem:[%s672] sm:$0xff]
  %v674 = vld [vmem:[%s672 + $0x8] sm:$0xff]
  %v675 = vld [vmem:[%s672 + $0x10] sm:$0xff]
  %v676 = vld [vmem:[%s672 + $0x18] sm:$0xff]
  %v677 = vpack.c.bf16 %v671, %v671
  %678 = vmatprep.subr.bf16.mxu0 %v151
  %679 = vmatpush1.bf16.msra.mxu0 %v150
  %680 = vmatprep.subr.bf16.mxu0 %v155
  %681 = vmatpush1.bf16.msra.mxu0 %v154
  %682 = vmatprep.subr.bf16.mxu0 %v159
  %683 = vmatpush1.bf16.msra.mxu0 %v158
  %684 = vmatprep.subr.bf16.mxu0 %v163
  %685 = vmatpush1.bf16.msra.mxu0 %v162
  %686 = vmatprep.subr.bf16.mxu0 %v167
  %687 = vmatpush1.bf16.msra.mxu0 %v166
  %688 = vmatprep.subr.bf16.mxu0 %v171
  %689 = vmatpush1.bf16.msra.mxu0 %v170
  %690 = vmatprep.subr.bf16.mxu0 %v175
  %691 = vmatpush1.bf16.msra.mxu0 %v174
  %692 = vmatprep.subr.bf16.mxu0 %v179
  %693 = vmatpush1.bf16.msra.mxu0 %v178
  %694 = vmatprep.subr.bf16.mxu0 0
  %695 = vmatpush1.bf16.msra.mxu0 0
  %696 = vmatprep.subr.bf16.mxu0 0
  %697 = vmatpush1.bf16.msra.mxu0 0
  %698 = vmatprep.subr.bf16.mxu0 0
  %699 = vmatpush1.bf16.msra.mxu0 0
  %700 = vmatprep.subr.bf16.mxu0 0
  %701 = vmatpush1.bf16.msra.mxu0 0
  %702 = vmatprep.subr.bf16.mxu0 0
  %703 = vmatpush1.bf16.msra.mxu0 0
  %704 = vmatprep.subr.bf16.mxu0 0
  %705 = vmatpush1.bf16.msra.mxu0 0
  %706 = vmatprep.subr.bf16.mxu0 0
  %707 = vmatpush1.bf16.msra.mxu0 0
  %708 = vmatprep.subr.bf16.mxu0 0
  %709 = vmatpush1.bf16.msra.mxu0 0
  %710 = vmatprep.mubr.bf16.mxu0 0
  %711 = vmatmul.mubr.bf16.gmra.mrb[0].mxu0 %v677
  %v712 = vpop.f32.mrb[0].mxu0
  %v713 = vadd.f32 0.0, %v712
  %v714 = vpop.f32.mrb[0].mxu0
  %v715 = vadd.f32 0.0, %v714
  %v716 = vpop.f32.mrb[0].mxu0
  %v717 = vpop.f32.mrb[0].mxu0
  %718 = vdwg.mxu0
  %719 = vmatprep.subr.bf16.mxu0 %v153
  %720 = vmatpush1.bf16.msra.mxu0 %v152
  %721 = vmatprep.subr.bf16.mxu0 %v157
  %722 = vmatpush1.bf16.msra.mxu0 %v156
  %723 = vmatprep.subr.bf16.mxu0 %v161
  %724 = vmatpush1.bf16.msra.mxu0 %v160
  %725 = vmatprep.subr.bf16.mxu0 %v165
  %726 = vmatpush1.bf16.msra.mxu0 %v164
  %727 = vmatprep.subr.bf16.mxu0 %v169
  %728 = vmatpush1.bf16.msra.mxu0 %v168
  %729 = vmatprep.subr.bf16.mxu0 %v173
  %730 = vmatpush1.bf16.msra.mxu0 %v172
  %731 = vmatprep.subr.bf16.mxu0 %v177
  %732 = vmatpush1.bf16.msra.mxu0 %v176
  %733 = vmatprep.subr.bf16.mxu0 %v181
  %734 = vmatpush1.bf16.msra.mxu0 %v180
  %735 = vmatprep.subr.bf16.mxu0 0
  %736 = vmatpush1.bf16.msra.mxu0 0
  %737 = vmatprep.subr.bf16.mxu0 0
  %738 = vmatpush1.bf16.msra.mxu0 0
  %739 = vmatprep.subr.bf16.mxu0 0
  %740 = vmatpush1.bf16.msra.mxu0 0
  %741 = vmatprep.subr.bf16.mxu0 0
  %742 = vmatpush1.bf16.msra.mxu0 0
  %743 = vmatprep.subr.bf16.mxu0 0
  %744 = vmatpush1.bf16.msra.mxu0 0
  %745 = vmatprep.subr.bf16.mxu0 0
  %746 = vmatpush1.bf16.msra.mxu0 0
  %747 = vmatprep.subr.bf16.mxu0 0
  %748 = vmatpush1.bf16.msra.mxu0 0
  %749 = vmatprep.subr.bf16.mxu0 0
  %750 = vmatpush1.bf16.msra.mxu0 0
  %751 = vmatprep.mubr.bf16.mxu0 0
  %752 = vmatmul.mubr.bf16.gmra.mrb[0].mxu0 %v677
  %v753 = vpop.f32.mrb[0].mxu0
  %v754 = vadd.f32 0.0, %v753
  %v755 = vpop.f32.mrb[0].mxu0
  %v756 = vadd.f32 0.0, %v755
  %v757 = vpop.f32.mrb[0].mxu0
  %v758 = vpop.f32.mrb[0].mxu0
  %759 = vdwg.mxu0
  %v760 = vadd.f32 %v673, %v713
  %v761 = vadd.f32 %v674, %v715
  %v762 = vadd.f32 %v675, %v754
  %v763 = vadd.f32 %v676, %v756
  %v764 = vxor.u32 %v760, 2147483648
  %v765 = vmul.f32 %v764, 1.442695
  %v766 = vpow.pop %v765
  %v767 = vadd.f32 %v766, 1.0
  %v768 = vrcp.pop %v767
  %v769 = vmul.f32 1.0, %v768
  %v770 = vxor.u32 %v761, 2147483648
  %v771 = vmul.f32 %v770, 1.442695
  %v772 = vpow.pop %v771
  %v773 = vadd.f32 %v772, 1.0
  %v774 = vrcp.pop %v773
  %v775 = vmul.f32 1.0, %v774
  %v776 = vtanh.pop %v762
  %v777 = vxor.u32 %v763, 2147483648
  %v778 = vmul.f32 %v777, 1.442695
  %v779 = vpow.pop %v778
  %v780 = vadd.f32 %v779, 1.0
  %v781 = vrcp.pop %v780
  %v782 = vmul.f32 1.0, %v781
  %v783 = vmul.f32 %v775, %v669
  %v784 = vmul.f32 %v769, %v776
  %v785 = vadd.f32 %v783, %v784
  %v786 = vtanh.pop %v785
  %v787 = vmul.f32 %v782, %v786
  %s788 = scalar_lea.vmem %s0, 160
  %v789 = vld [vmem:[%s788] sm:$0xff]
  %v790 = vld [vmem:[%s788 + $0x8] sm:$0xff]
  %v791 = vld [vmem:[%s788 + $0x10] sm:$0xff]
  %v792 = vld [vmem:[%s788 + $0x18] sm:$0xff]
  %v793 = vpack.c.bf16 %v787, %v787
  %794 = vmatprep.subr.bf16.mxu0 %v151
  %795 = vmatpush1.bf16.msra.mxu0 %v150
  %796 = vmatprep.subr.bf16.mxu0 %v155
  %797 = vmatpush1.bf16.msra.mxu0 %v154
  %798 = vmatprep.subr.bf16.mxu0 %v159
  %799 = vmatpush1.bf16.msra.mxu0 %v158
  %800 = vmatprep.subr.bf16.mxu0 %v163
  %801 = vmatpush1.bf16.msra.mxu0 %v162
  %802 = vmatprep.subr.bf16.mxu0 %v167
  %803 = vmatpush1.bf16.msra.mxu0 %v166
  %804 = vmatprep.subr.bf16.mxu0 %v171
  %805 = vmatpush1.bf16.msra.mxu0 %v170
  %806 = vmatprep.subr.bf16.mxu0 %v175
  %807 = vmatpush1.bf16.msra.mxu0 %v174
  %808 = vmatprep.subr.bf16.mxu0 %v179
  %809 = vmatpush1.bf16.msra.mxu0 %v178
  %810 = vmatprep.subr.bf16.mxu0 0
  %811 = vmatpush1.bf16.msra.mxu0 0
  %812 = vmatprep.subr.bf16.mxu0 0
  %813 = vmatpush1.bf16.msra.mxu0 0
  %814 = vmatprep.subr.bf16.mxu0 0
  %815 = vmatpush1.bf16.msra.mxu0 0
  %816 = vmatprep.subr.bf16.mxu0 0
  %817 = vmatpush1.bf16.msra.mxu0 0
  %818 = vmatprep.subr.bf16.mxu0 0
  %819 = vmatpush1.bf16.msra.mxu0 0
  %820 = vmatprep.subr.bf16.mxu0 0
  %821 = vmatpush1.bf16.msra.mxu0 0
  %822 = vmatprep.subr.bf16.mxu0 0
  %823 = vmatpush1.bf16.msra.mxu0 0
  %824 = vmatprep.subr.bf16.mxu0 0
  %825 = vmatpush1.bf16.msra.mxu0 0
  %826 = vmatprep.mubr.bf16.mxu0 0
  %827 = vmatmul.mubr.bf16.gmra.mrb[0].mxu0 %v793
  %v828 = vpop.f32.mrb[0].mxu0
  %v829 = vadd.f32 0.0, %v828
  %v830 = vpop.f32.mrb[0].mxu0
  %v831 = vadd.f32 0.0, %v830
  %v832 = vpop.f32.mrb[0].mxu0
  %v833 = vpop.f32.mrb[0].mxu0
  %834 = vdwg.mxu0
  %835 = vmatprep.subr.bf16.mxu0 %v153
  %836 = vmatpush1.bf16.msra.mxu0 %v152
  %837 = vmatprep.subr.bf16.mxu0 %v157
  %838 = vmatpush1.bf16.msra.mxu0 %v156
  %839 = vmatprep.subr.bf16.mxu0 %v161
  %840 = vmatpush1.bf16.msra.mxu0 %v160
  %841 = vmatprep.subr.bf16.mxu0 %v165
  %842 = vmatpush1.bf16.msra.mxu0 %v164
  %843 = vmatprep.subr.bf16.mxu0 %v169
  %844 = vmatpush1.bf16.msra.mxu0 %v168
  %845 = vmatprep.subr.bf16.mxu0 %v173
  %846 = vmatpush1.bf16.msra.mxu0 %v172
  %847 = vmatprep.subr.bf16.mxu0 %v177
  %848 = vmatpush1.bf16.msra.mxu0 %v176
  %849 = vmatprep.subr.bf16.mxu0 %v181
  %850 = vmatpush1.bf16.msra.mxu0 %v180
  %851 = vmatprep.subr.bf16.mxu0 0
  %852 = vmatpush1.bf16.msra.mxu0 0
  %853 = vmatprep.subr.bf16.mxu0 0
  %854 = vmatpush1.bf16.msra.mxu0 0
  %855 = vmatprep.subr.bf16.mxu0 0
  %856 = vmatpush1.bf16.msra.mxu0 0
  %857 = vmatprep.subr.bf16.mxu0 0
  %858 = vmatpush1.bf16.msra.mxu0 0
  %859 = vmatprep.subr.bf16.mxu0 0
  %860 = vmatpush1.bf16.msra.mxu0 0
  %861 = vmatprep.subr.bf16.mxu0 0
  %862 = vmatpush1.bf16.msra.mxu0 0
  %863 = vmatprep.subr.bf16.mxu0 0
  %864 = vmatpush1.bf16.msra.mxu0 0
  %865 = vmatprep.subr.bf16.mxu0 0
  %866 = vmatpush1.bf16.msra.mxu0 0
  %867 = vmatprep.mubr.bf16.mxu0 0
  %868 = vmatmul.mubr.bf16.gmra.mrb[0].mxu0 %v793
  %v869 = vpop.f32.mrb[0].mxu0
  %v870 = vadd.f32 0.0, %v869
  %v871 = vpop.f32.mrb[0].mxu0
  %v872 = vadd.f32 0.0, %v871
  %v873 = vpop.f32.mrb[0].mxu0
  %v874 = vpop.f32.mrb[0].mxu0
  %875 = vdwg.mxu0
  %v876 = vadd.f32 %v789, %v829
  %v877 = vadd.f32 %v790, %v831
  %v878 = vadd.f32 %v791, %v870
  %v879 = vadd.f32 %v792, %v872
  %v880 = vxor.u32 %v876, 2147483648
  %v881 = vmul.f32 %v880, 1.442695
  %v882 = vpow.pop %v881
  %v883 = vadd.f32 %v882, 1.0
  %v884 = vrcp.pop %v883
  %v885 = vmul.f32 1.0, %v884
  %v886 = vxor.u32 %v877, 2147483648
  %v887 = vmul.f32 %v886, 1.442695
  %v888 = vpow.pop %v887
  %v889 = vadd.f32 %v888, 1.0
  %v890 = vrcp.pop %v889
  %v891 = vmul.f32 1.0, %v890
  %v892 = vtanh.pop %v878
  %v893 = vxor.u32 %v879, 2147483648
  %v894 = vmul.f32 %v893, 1.442695
  %v895 = vpow.pop %v894
  %v896 = vadd.f32 %v895, 1.0
  %v897 = vrcp.pop %v896
  %v898 = vmul.f32 1.0, %v897
  %v899 = vmul.f32 %v891, %v785
  %v900 = vmul.f32 %v885, %v892
  %v901 = vadd.f32 %v899, %v900
  %v902 = vtanh.pop %v901
  %v903 = vmul.f32 %v898, %v902
  %s904 = scalar_lea.vmem %s0, 192
  %v905 = vld [vmem:[%s904] sm:$0xff]
  %v906 = vld [vmem:[%s904 + $0x8] sm:$0xff]
  %v907 = vld [vmem:[%s904 + $0x10] sm:$0xff]
  %v908 = vld [vmem:[%s904 + $0x18] sm:$0xff]
  %v909 = vpack.c.bf16 %v903, %v903
  %910 = vmatprep.subr.bf16.mxu0 %v151
  %911 = vmatpush1.bf16.msra.mxu0 %v150
  %912 = vmatprep.subr.bf16.mxu0 %v155
  %913 = vmatpush1.bf16.msra.mxu0 %v154
  %914 = vmatprep.subr.bf16.mxu0 %v159
  %915 = vmatpush1.bf16.msra.mxu0 %v158
  %916 = vmatprep.subr.bf16.mxu0 %v163
  %917 = vmatpush1.bf16.msra.mxu0 %v162
  %918 = vmatprep.subr.bf16.mxu0 %v167
  %919 = vmatpush1.bf16.msra.mxu0 %v166
  %920 = vmatprep.subr.bf16.mxu0 %v171
  %921 = vmatpush1.bf16.msra.mxu0 %v170
  %922 = vmatprep.subr.bf16.mxu0 %v175
  %923 = vmatpush1.bf16.msra.mxu0 %v174
  %924 = vmatprep.subr.bf16.mxu0 %v179
  %925 = vmatpush1.bf16.msra.mxu0 %v178
  %926 = vmatprep.subr.bf16.mxu0 0
  %927 = vmatpush1.bf16.msra.mxu0 0
  %928 = vmatprep.subr.bf16.mxu0 0
  %929 = vmatpush1.bf16.msra.mxu0 0
  %930 = vmatprep.subr.bf16.mxu0 0
  %931 = vmatpush1.bf16.msra.mxu0 0
  %932 = vmatprep.subr.bf16.mxu0 0
  %933 = vmatpush1.bf16.msra.mxu0 0
  %934 = vmatprep.subr.bf16.mxu0 0
  %935 = vmatpush1.bf16.msra.mxu0 0
  %936 = vmatprep.subr.bf16.mxu0 0
  %937 = vmatpush1.bf16.msra.mxu0 0
  %938 = vmatprep.subr.bf16.mxu0 0
  %939 = vmatpush1.bf16.msra.mxu0 0
  %940 = vmatprep.subr.bf16.mxu0 0
  %941 = vmatpush1.bf16.msra.mxu0 0
  %942 = vmatprep.mubr.bf16.mxu0 0
  %943 = vmatmul.mubr.bf16.gmra.mrb[0].mxu0 %v909
  %v944 = vpop.f32.mrb[0].mxu0
  %v945 = vadd.f32 0.0, %v944
  %v946 = vpop.f32.mrb[0].mxu0
  %v947 = vadd.f32 0.0, %v946
  %v948 = vpop.f32.mrb[0].mxu0
  %v949 = vpop.f32.mrb[0].mxu0
  %950 = vdwg.mxu0
  %951 = vmatprep.subr.bf16.mxu0 %v153
  %952 = vmatpush1.bf16.msra.mxu0 %v152
  %953 = vmatprep.subr.bf16.mxu0 %v157
  %954 = vmatpush1.bf16.msra.mxu0 %v156
  %955 = vmatprep.subr.bf16.mxu0 %v161
  %956 = vmatpush1.bf16.msra.mxu0 %v160
  %957 = vmatprep.subr.bf16.mxu0 %v165
  %958 = vmatpush1.bf16.msra.mxu0 %v164
  %959 = vmatprep.subr.bf16.mxu0 %v169
  %960 = vmatpush1.bf16.msra.mxu0 %v168
  %961 = vmatprep.subr.bf16.mxu0 %v173
  %962 = vmatpush1.bf16.msra.mxu0 %v172
  %963 = vmatprep.subr.bf16.mxu0 %v177
  %964 = vmatpush1.bf16.msra.mxu0 %v176
  %965 = vmatprep.subr.bf16.mxu0 %v181
  %966 = vmatpush1.bf16.msra.mxu0 %v180
  %967 = vmatprep.subr.bf16.mxu0 0
  %968 = vmatpush1.bf16.msra.mxu0 0
  %969 = vmatprep.subr.bf16.mxu0 0
  %970 = vmatpush1.bf16.msra.mxu0 0
  %971 = vmatprep.subr.bf16.mxu0 0
  %972 = vmatpush1.bf16.msra.mxu0 0
  %973 = vmatprep.subr.bf16.mxu0 0
  %974 = vmatpush1.bf16.msra.mxu0 0
  %975 = vmatprep.subr.bf16.mxu0 0
  %976 = vmatpush1.bf16.msra.mxu0 0
  %977 = vmatprep.subr.bf16.mxu0 0
  %978 = vmatpush1.bf16.msra.mxu0 0
  %979 = vmatprep.subr.bf16.mxu0 0
  %980 = vmatpush1.bf16.msra.mxu0 0
  %981 = vmatprep.subr.bf16.mxu0 0
  %982 = vmatpush1.bf16.msra.mxu0 0
  %983 = vmatprep.mubr.bf16.mxu0 0
  %984 = vmatmul.mubr.bf16.gmra.mrb[0].mxu0 %v909
  %v985 = vpop.f32.mrb[0].mxu0
  %v986 = vadd.f32 0.0, %v985
  %v987 = vpop.f32.mrb[0].mxu0
  %v988 = vadd.f32 0.0, %v987
  %v989 = vpop.f32.mrb[0].mxu0
  %v990 = vpop.f32.mrb[0].mxu0
  %991 = vdwg.mxu0
  %v992 = vadd.f32 %v905, %v945
  %v993 = vadd.f32 %v906, %v947
  %v994 = vadd.f32 %v907, %v986
  %v995 = vadd.f32 %v908, %v988
  %v996 = vxor.u32 %v992, 2147483648
  %v997 = vmul.f32 %v996, 1.442695
  %v998 = vpow.pop %v997
  %v999 = vadd.f32 %v998, 1.0
  %v1000 = vrcp.pop %v999
  %v1001 = vmul.f32 1.0, %v1000
  %v1002 = vxor.u32 %v993, 2147483648
  %v1003 = vmul.f32 %v1002, 1.442695
  %v1004 = vpow.pop %v1003
  %v1005 = vadd.f32 %v1004, 1.0
  %v1006 = vrcp.pop %v1005
  %v1007 = vmul.f32 1.0, %v1006
  %v1008 = vtanh.pop %v994
  %v1009 = vxor.u32 %v995, 2147483648
  %v1010 = vmul.f32 %v1009, 1.442695
  %v1011 = vpow.pop %v1010
  %v1012 = vadd.f32 %v1011, 1.0
  %v1013 = vrcp.pop %v1012
  %v1014 = vmul.f32 1.0, %v1013
  %v1015 = vmul.f32 %v1007, %v901
  %v1016 = vmul.f32 %v1001, %v1008
  %v1017 = vadd.f32 %v1015, %v1016
  %v1018 = vtanh.pop %v1017
  %v1019 = vmul.f32 %v1014, %v1018
  %s1020 = scalar_lea.vmem %s0, 224
  %v1021 = vld [vmem:[%s1020] sm:$0xff]
  %v1022 = vld [vmem:[%s1020 + $0x8] sm:$0xff]
  %v1023 = vld [vmem:[%s1020 + $0x10] sm:$0xff]
  %v1024 = vld [vmem:[%s1020 + $0x18] sm:$0xff]
  %v1025 = vpack.c.bf16 %v1019, %v1019
  %1026 = vmatprep.subr.bf16.mxu0 %v151
  %1027 = vmatpush1.bf16.msra.mxu0 %v150
  %1028 = vmatprep.subr.bf16.mxu0 %v155
  %1029 = vmatpush1.bf16.msra.mxu0 %v154
  %1030 = vmatprep.subr.bf16.mxu0 %v159
  %1031 = vmatpush1.bf16.msra.mxu0 %v158
  %1032 = vmatprep.subr.bf16.mxu0 %v163
  %1033 = vmatpush1.bf16.msra.mxu0 %v162
  %1034 = vmatprep.subr.bf16.mxu0 %v167
  %1035 = vmatpush1.bf16.msra.mxu0 %v166
  %1036 = vmatprep.subr.bf16.mxu0 %v171
  %1037 = vmatpush1.bf16.msra.mxu0 %v170
  %1038 = vmatprep.subr.bf16.mxu0 %v175
  %1039 = vmatpush1.bf16.msra.mxu0 %v174
  %1040 = vmatprep.subr.bf16.mxu0 %v179
  %1041 = vmatpush1.bf16.msra.mxu0 %v178
  %1042 = vmatprep.subr.bf16.mxu0 0
  %1043 = vmatpush1.bf16.msra.mxu0 0
  %1044 = vmatprep.subr.bf16.mxu0 0
  %1045 = vmatpush1.bf16.msra.mxu0 0
  %1046 = vmatprep.subr.bf16.mxu0 0
  %1047 = vmatpush1.bf16.msra.mxu0 0
  %1048 = vmatprep.subr.bf16.mxu0 0
  %1049 = vmatpush1.bf16.msra.mxu0 0
  %1050 = vmatprep.subr.bf16.mxu0 0
  %1051 = vmatpush1.bf16.msra.mxu0 0
  %1052 = vmatprep.subr.bf16.mxu0 0
  %1053 = vmatpush1.bf16.msra.mxu0 0
  %1054 = vmatprep.subr.bf16.mxu0 0
  %1055 = vmatpush1.bf16.msra.mxu0 0
  %1056 = vmatprep.subr.bf16.mxu0 0
  %1057 = vmatpush1.bf16.msra.mxu0 0
  %1058 = vmatprep.mubr.bf16.mxu0 0
  %1059 = vmatmul.mubr.bf16.gmra.mrb[0].mxu0 %v1025
  %v1060 = vpop.f32.mrb[0].mxu0
  %v1061 = vadd.f32 0.0, %v1060
  %v1062 = vpop.f32.mrb[0].mxu0
  %v1063 = vadd.f32 0.0, %v1062
  %v1064 = vpop.f32.mrb[0].mxu0
  %v1065 = vpop.f32.mrb[0].mxu0
  %1066 = vdwg.mxu0
  %1067 = vmatprep.subr.bf16.mxu0 %v153
  %1068 = vmatpush1.bf16.msra.mxu0 %v152
  %1069 = vmatprep.subr.bf16.mxu0 %v157
  %1070 = vmatpush1.bf16.msra.mxu0 %v156
  %1071 = vmatprep.subr.bf16.mxu0 %v161
  %1072 = vmatpush1.bf16.msra.mxu0 %v160
  %1073 = vmatprep.subr.bf16.mxu0 %v165
  %1074 = vmatpush1.bf16.msra.mxu0 %v164
  %1075 = vmatprep.subr.bf16.mxu0 %v169
  %1076 = vmatpush1.bf16.msra.mxu0 %v168
  %1077 = vmatprep.subr.bf16.mxu0 %v173
  %1078 = vmatpush1.bf16.msra.mxu0 %v172
  %1079 = vmatprep.subr.bf16.mxu0 %v177
  %1080 = vmatpush1.bf16.msra.mxu0 %v176
  %1081 = vmatprep.subr.bf16.mxu0 %v181
  %1082 = vmatpush1.bf16.msra.mxu0 %v180
  %1083 = vmatprep.subr.bf16.mxu0 0
  %1084 = vmatpush1.bf16.msra.mxu0 0
  %1085 = vmatprep.subr.bf16.mxu0 0
  %1086 = vmatpush1.bf16.msra.mxu0 0
  %1087 = vmatprep.subr.bf16.mxu0 0
  %1088 = vmatpush1.bf16.msra.mxu0 0
  %1089 = vmatprep.subr.bf16.mxu0 0
  %1090 = vmatpush1.bf16.msra.mxu0 0
  %1091 = vmatprep.subr.bf16.mxu0 0
  %1092 = vmatpush1.bf16.msra.mxu0 0
  %1093 = vmatprep.subr.bf16.mxu0 0
  %1094 = vmatpush1.bf16.msra.mxu0 0
  %1095 = vmatprep.subr.bf16.mxu0 0
  %1096 = vmatpush1.bf16.msra.mxu0 0
  %1097 = vmatprep.subr.bf16.mxu0 0
  %1098 = vmatpush1.bf16.msra.mxu0 0
  %1099 = vmatprep.mubr.bf16.mxu0 0
  %1100 = vmatmul.mubr.bf16.gmra.mrb[0].mxu0 %v1025
  %v1101 = vpop.f32.mrb[0].mxu0
  %v1102 = vadd.f32 0.0, %v1101
  %v1103 = vpop.f32.mrb[0].mxu0
  %v1104 = vadd.f32 0.0, %v1103
  %v1105 = vpop.f32.mrb[0].mxu0
  %v1106 = vpop.f32.mrb[0].mxu0
  %1107 = vdwg.mxu0
  %v1108 = vadd.f32 %v1021, %v1061
  %v1109 = vadd.f32 %v1022, %v1063
  %v1110 = vadd.f32 %v1023, %v1102
  %v1111 = vadd.f32 %v1024, %v1104
  %v1112 = vxor.u32 %v1108, 2147483648
  %v1113 = vmul.f32 %v1112, 1.442695
  %v1114 = vpow.pop %v1113
  %v1115 = vadd.f32 %v1114, 1.0
  %v1116 = vrcp.pop %v1115
  %v1117 = vmul.f32 1.0, %v1116
  %v1118 = vxor.u32 %v1109, 2147483648
  %v1119 = vmul.f32 %v1118, 1.442695
  %v1120 = vpow.pop %v1119
  %v1121 = vadd.f32 %v1120, 1.0
  %v1122 = vrcp.pop %v1121
  %v1123 = vmul.f32 1.0, %v1122
  %v1124 = vtanh.pop %v1110
  %v1125 = vxor.u32 %v1111, 2147483648
  %v1126 = vmul.f32 %v1125, 1.442695
  %v1127 = vpow.pop %v1126
  %v1128 = vadd.f32 %v1127, 1.0
  %v1129 = vrcp.pop %v1128
  %v1130 = vmul.f32 1.0, %v1129
  %v1131 = vmul.f32 %v1123, %v1017
  %v1132 = vmul.f32 %v1117, %v1124
  %v1133 = vadd.f32 %v1131, %v1132
  %v1134 = vtanh.pop %v1133
  %v1135 = vmul.f32 %v1130, %v1134
  %v1136 = vpack.c.bf16 %v1135, %v1135
  %v1137 = vld [vmem:[%s2] sm:$0xf]
  %v1138 = vld [vmem:[%s2 + $0x4] sm:$0xf]
  %v1139 = vld [vmem:[%s2 + $0x8] sm:$0xf]
  %v1140 = vld [vmem:[%s2 + $0xc] sm:$0xf]
  %v1141 = vld [vmem:[%s2 + $0x10] sm:$0xf]
  %v1142 = vld [vmem:[%s2 + $0x14] sm:$0xf]
  %v1143 = vld [vmem:[%s2 + $0x18] sm:$0xf]
  %v1144 = vld [vmem:[%s2 + $0x1c] sm:$0xf]
  %v1145 = vld [vmem:[%s2 + $0x20] sm:$0xf]
  %v1146 = vld [vmem:[%s2 + $0x24] sm:$0xf]
  %v1147 = vld [vmem:[%s2 + $0x28] sm:$0xf]
  %v1148 = vld [vmem:[%s2 + $0x2c] sm:$0xf]
  %v1149 = vld [vmem:[%s2 + $0x30] sm:$0xf]
  %v1150 = vld [vmem:[%s2 + $0x34] sm:$0xf]
  %v1151 = vld [vmem:[%s2 + $0x38] sm:$0xf]
  %v1152 = vld [vmem:[%s2 + $0x3c] sm:$0xf]
  %v1153 = vld [vmem:[%s3] sm:$0x1]
  %v1155 = vlaneseq
  %v1156 = vshrl.u32 %v1155, 7
  %v1157 = vsub.s32 0, %v1156
  %v1158 = vrot.slane %v1153, %v1157
  %v1176 = vunpack.c.l.b16 %v1137
  %v1177 = vunpack.c.l.b16 %v1138
  %v1178 = vunpack.c.l.b16 %v1139
  %v1179 = vunpack.c.l.b16 %v1140
  %v1180 = vunpack.c.l.b16 %v1141
  %v1181 = vunpack.c.l.b16 %v1142
  %v1182 = vunpack.c.l.b16 %v1143
  %v1183 = vunpack.c.l.b16 %v1144
  %v1184 = vunpack.c.l.b16 %v1145
  %v1185 = vunpack.c.l.b16 %v1146
  %v1186 = vunpack.c.l.b16 %v1147
  %v1187 = vunpack.c.l.b16 %v1148
  %v1188 = vunpack.c.l.b16 %v1149
  %v1189 = vunpack.c.l.b16 %v1150
  %v1190 = vunpack.c.l.b16 %v1151
  %v1191 = vunpack.c.l.b16 %v1152
  %v1192 = vpack.c.b16 %v1177, %v1176
  %v1193 = vpack.c.b16 %v1179, %v1178
  %v1194 = vpack.c.b16 %v1181, %v1180
  %v1195 = vpack.c.b16 %v1183, %v1182
  %v1196 = vpack.c.b16 %v1185, %v1184
  %v1197 = vpack.c.b16 %v1187, %v1186
  %v1198 = vpack.c.b16 %v1189, %v1188
  %v1199 = vpack.c.b16 %v1191, %v1190
  %1208 = vmatprep.subr.bf16.mxu0 0
  %1209 = vmatpush1.bf16.msra.mxu0 %v1192
  %1210 = vmatprep.subr.bf16.mxu0 0
  %1211 = vmatpush1.bf16.msra.mxu0 %v1193
  %1212 = vmatprep.subr.bf16.mxu0 0
  %1213 = vmatpush1.bf16.msra.mxu0 %v1194
  %1214 = vmatprep.subr.bf16.mxu0 0
  %1215 = vmatpush1.bf16.msra.mxu0 %v1195
  %1216 = vmatprep.subr.bf16.mxu0 0
  %1217 = vmatpush1.bf16.msra.mxu0 %v1196
  %1218 = vmatprep.subr.bf16.mxu0 0
  %1219 = vmatpush1.bf16.msra.mxu0 %v1197
  %1220 = vmatprep.subr.bf16.mxu0 0
  %1221 = vmatpush1.bf16.msra.mxu0 %v1198
  %1222 = vmatprep.subr.bf16.mxu0 0
  %1223 = vmatpush1.bf16.msra.mxu0 %v1199
  %1224 = vmatprep.subr.bf16.mxu0 0
  %1225 = vmatpush1.bf16.msra.mxu0 0
  %1226 = vmatprep.subr.bf16.mxu0 0
  %1227 = vmatpush1.bf16.msra.mxu0 0
  %1228 = vmatprep.subr.bf16.mxu0 0
  %1229 = vmatpush1.bf16.msra.mxu0 0
  %1230 = vmatprep.subr.bf16.mxu0 0
  %1231 = vmatpush1.bf16.msra.mxu0 0
  %1232 = vmatprep.subr.bf16.mxu0 0
  %1233 = vmatpush1.bf16.msra.mxu0 0
  %1234 = vmatprep.subr.bf16.mxu0 0
  %1235 = vmatpush1.bf16.msra.mxu0 0
  %1236 = vmatprep.subr.bf16.mxu0 0
  %1237 = vmatpush1.bf16.msra.mxu0 0
  %1238 = vmatprep.subr.bf16.mxu0 0
  %1239 = vmatpush1.bf16.msra.mxu0 0
  %1240 = vmatprep.mubr.bf16.mxu0 0
  %1241 = vmatmul.mubr.bf16.gmra.mrb[0].mxu0 %v1136
  %v1242 = vpop.f32.mrb[0].mxu0
  %v1243 = vadd.f32 %v1158, %v1242
  %v1244 = vpop.f32.mrb[0].mxu0
  %v1245 = vpop.f32.mrb[0].mxu0
  %v1246 = vpop.f32.mrb[0].mxu0
  %1247 = vdwg.mxu0
  %1248 = vst [vmem:[%s4] sm:$0xff] %v1243
  // Predicated region
  $region18: #{text_lstm_forward.1} parent=0 // pred_check
    _
  $region19: #{text_lstm_forward.1} parent=0 // pred_check_branch
    %1250 = sbr.rel (0) target = $region21
  $region20: #{text_lstm_forward.1} parent=0 // pred_region
    _
  $region21: #{text_lstm_forward.1} parent=0 // pred_fallthru
    _
  // Predicated region
  $region22: #{text_lstm_forward.1} parent=0 // pred_check
    _
  $region23: #{text_lstm_forward.1} parent=0 // pred_check_branch
    %1252 = sbr.rel (0) target = $region25
  $region24: #{text_lstm_forward.1} parent=0 // pred_region
    _
  $region25: #{text_lstm_forward.1} parent=0 // pred_fallthru
    _

</llo_original>
